<compile_context>
chip_gen: v7x
topology: tpu7x:2x2x1
jax: 0.10.0
libtpu: 0.0.40
codegen_flags: <defaults>
</compile_context>

<pallas_src>
import jax
import jax.numpy as jnp
from jax.experimental import pallas as pl
from jax.experimental.pallas import tpu as pltpu

INPUT_LENGTH = 5
MAX_LENGTH = 50
HIDDEN = 128          # decoder hidden size == embedding dim of WeightsN2 (128 columns)


def _use_fused_projection():
    """K=256 fused [x|hidden] projection fills a 256x256 MXU (v6e/v7x). On the
    128x128 MXUs of v5e and earlier the zero-padded fusion pushes ~50% more
    weight tiles, so keep the two K=128 projections there."""
    try:
        kind = jax.devices()[0].device_kind.lower()
    except Exception:
        return True
    return not any(tag in kind for tag in ("v2", "v3", "v4", "v5"))


def _make_decoder_kernel(fuse_xy, H, Lp):
    """Build the T-step decode kernel. One grid step == one decoder step."""

    def kernel(tok_ref, emb_ref, hid0_ref, enc_c_ref, *args):
        # tok_ref : (T,)  int32 SMEM (scalar-prefetched token ids)
        # emb_ref : (V, H)      embedding table (resident)
        # hid0_ref: (1, H)      initial hidden state
        # enc_c_ref: (Lp, H)    encoder outputs with W_combine_attn pre-folded in
        if fuse_xy:
            (wxy_ref, ba_ref, bc_ref, wih_ref, bih_ref, bhh_ref,
             wout_ref, bout_ref,
             out_ref, attnw_ref, hidseq_ref, hid_sc) = args
        else:
            (wx_ref, wy_ref, ba_ref, bc_ref, wih_ref, bih_ref, bhh_ref,
             wout_ref, bout_ref,
             out_ref, attnw_ref, hidseq_ref, hid_sc) = args

        t = pl.program_id(0)

        @pl.when(t == 0)
        def _():
            hid_sc[...] = hid0_ref[...]

        tok = tok_ref[t]
        x = emb_ref[pl.ds(tok, 1), :]          # (1, H) embedded token (dropout == identity, eval)
        y = hid_sc[...]                        # (1, H) carried hidden state

        if fuse_xy:
            # One K=256 matmul: [x|y] @ [[Wa_x | Wc_x | 0], [Wa_y | 0 | Whh^T]]
            xy = jnp.concatenate([x, y], axis=-1)                               # (1, 2H)
            proj = jnp.dot(xy, wxy_ref[...], preferred_element_type=jnp.float32)  # (1, Lp+4H)
            attn_pre = proj[:, 0:Lp]
            comb_x = proj[:, Lp:Lp + H]
            gh_pre = proj[:, Lp + H:Lp + 4 * H]
        else:
            # Two K=128 matmuls (v5e-friendly)
            xp = jnp.dot(x, wx_ref[...], preferred_element_type=jnp.float32)    # (1, Lp+H)
            yp = jnp.dot(y, wy_ref[...], preferred_element_type=jnp.float32)    # (1, Lp+3H)
            attn_pre = xp[:, 0:Lp] + yp[:, 0:Lp]
            comb_x = xp[:, Lp:Lp + H]
            gh_pre = yp[:, Lp:Lp + 3 * H]

        # --- attention softmax over Lp scores (pads have bias -1e30 -> weight 0) ---
        logits = attn_pre + ba_ref[...]
        m = jnp.max(logits, axis=-1, keepdims=True)
        e = jnp.exp(logits - m)
        s = jnp.sum(e, axis=-1, keepdims=True)
        inv_s = pl.reciprocal(s, approx=False)       # exact; approx would break 1e-5 attn tol
        attnw_ref[0] = e * inv_s

        # Attention context: W_combine_attn already folded into enc_c, so a single
        # (1,Lp)@(Lp,H) matmul; scale the small (1,H) result by 1/sum instead of
        # dividing the (1,Lp) scores.
        ctx = jnp.dot(e, enc_c_ref[...], preferred_element_type=jnp.float32) * inv_s

        # --- attn_combine + relu ---
        gru_in = jnp.maximum(comb_x + ctx + bc_ref[...], 0.0)

        # --- single GRU step (PyTorch gate order r, z, n) ---
        gx = jnp.dot(gru_in, wih_ref[...], preferred_element_type=jnp.float32) + bih_ref[...]
        gh = gh_pre + bhh_ref[...]
        r = jax.nn.sigmoid(gx[:, 0:H] + gh[:, 0:H])
        z = jax.nn.sigmoid(gx[:, H:2 * H] + gh[:, H:2 * H])
        n = jnp.tanh(gx[:, 2 * H:3 * H] + r * gh[:, 2 * H:3 * H])
        h_new = (1.0 - z) * n + z * y

        hid_sc[...] = h_new                    # carry to next grid step
        hidseq_ref[0] = h_new

        # --- output projection + log_softmax ---
        lo = jnp.dot(h_new, wout_ref[...], preferred_element_type=jnp.float32) + bout_ref[...]
        mo = jnp.max(lo, axis=-1, keepdims=True)
        lse = jnp.log(jnp.sum(jnp.exp(lo - mo), axis=-1, keepdims=True)) + mo
        out_ref[0] = lo - lse

    return kernel


def prepare_params(torch_params, fuse_xy=None):
    """One-time layout plumbing: transpose to x@W form, fuse per-operand weights,
    pad the attention axis to a multiple of 128 (lane-dense). Gated on device kind:
    fused K=256 [x|y] projection for 256x256 MXUs, K=128 split for v5e/older."""
    emb, Wa, ba, Wc, bc, Wih, Whh, bih, bhh, Wout, bout = [
        jnp.asarray(a, jnp.float32) for a in torch_params]
    if fuse_xy is None:
        fuse_xy = _use_fused_projection()

    H = emb.shape[1]
    L = Wa.shape[0]
    Lp = ((L + 127) // 128) * 128
    pad = Lp - L

    Wa_x = jnp.pad(Wa[:, :H].T, ((0, 0), (0, pad)))            # (H, Lp)
    Wa_y = jnp.pad(Wa[:, H:].T, ((0, 0), (0, pad)))            # (H, Lp)
    ba_p = jnp.pad(ba, (0, pad), constant_values=-1e30).reshape(1, Lp)
    Wc_x = Wc[:, :H].T                                         # (H, H)
    Wc_a = Wc[:, H:].T                                         # (H, H) -> folded into enc_c per seq
    Whh_T = Whh.T                                              # (H, 3H)

    if fuse_xy:
        top = jnp.concatenate([Wa_x, Wc_x, jnp.zeros((H, 3 * H), jnp.float32)], axis=1)
        bot = jnp.concatenate([Wa_y, jnp.zeros((H, H), jnp.float32), Whh_T], axis=1)
        proj = (jnp.concatenate([top, bot], axis=0),)          # (2H, Lp + 4H)
    else:
        proj = (jnp.concatenate([Wa_x, Wc_x], axis=1),         # (H, Lp + H)
                jnp.concatenate([Wa_y, Whh_T], axis=1))        # (H, Lp + 3H)

    return dict(emb=emb, proj=proj, ba=ba_p, Wca=Wc_a, bc=bc.reshape(1, H),
                Wih=Wih.T, bih=bih.reshape(1, -1), bhh=bhh.reshape(1, -1),
                Wout=Wout.T, bout=bout.reshape(1, -1),
                H=H, L=L, Lp=Lp, fuse_xy=fuse_xy)


def attn_decoder_decode(tokens, hidden0, encoder_outputs, p):
    """Run T decoder steps in ONE pallas_call (teacher-forced token sequence).
    tokens: (T,) int32; hidden0: (1,1,H); encoder_outputs: (L,H).
    Returns (log_probs (T,O), hidden_seq (T,H), attn_weights (T,L))."""
    H, L, Lp = p["H"], p["L"], p["Lp"]
    O = p["Wout"].shape[1]
    T = int(tokens.shape[0])

    toks = tokens.reshape(T).astype(jnp.int32)
    hid0 = hidden0.reshape(1, H).astype(jnp.float32)

    # Once-per-sequence plumbing (amortized over all T in-kernel steps):
    enc_p = jnp.pad(encoder_outputs.astype(jnp.float32), ((0, Lp - L), (0, 0)))
    enc_c = jnp.dot(enc_p, p["Wca"], preferred_element_type=jnp.float32)       # (Lp, H)

    inputs = (p["emb"], hid0, enc_c) + tuple(p["proj"]) + (
        p["ba"], p["bc"], p["Wih"], p["bih"], p["bhh"], p["Wout"], p["bout"])

    const2d = lambda t, tok: (0, 0)          # resident: DMA'd once, reused every step
    in_specs = [pl.BlockSpec(a.shape, const2d) for a in inputs]
    out_specs = (pl.BlockSpec((1, 1, O), lambda t, tok: (t, 0, 0)),
                 pl.BlockSpec((1, 1, Lp), lambda t, tok: (t, 0, 0)),
                 pl.BlockSpec((1, 1, H), lambda t, tok: (t, 0, 0)))
    out_shape = (jax.ShapeDtypeStruct((T, 1, O), jnp.float32),
                 jax.ShapeDtypeStruct((T, 1, Lp), jnp.float32),
                 jax.ShapeDtypeStruct((T, 1, H), jnp.float32))

    grid_spec = pltpu.PrefetchScalarGridSpec(
        num_scalar_prefetch=1,
        grid=(T,),
        in_specs=in_specs,
        out_specs=out_specs,
        scratch_shapes=[pltpu.VMEM((1, H), jnp.float32)],      # carried hidden state
    )

    logp, attn_p, hid_seq = pl.pallas_call(
        _make_decoder_kernel(p["fuse_xy"], H, Lp),
        out_shape=out_shape,
        grid_spec=grid_spec,
        compiler_params=pltpu.CompilerParams(dimension_semantics=("arbitrary",)),
    )(toks, *inputs)

    return (logp.reshape(T, O),
            hid_seq.reshape(T, H),
            attn_p.reshape(T, Lp)[:, :L])      # drop padded attention columns once


def attn_decoder_forward(token, hidden, encoder_outputs, p):
    """Single decoder step, matching AttnDecoderRNN.forward:
    returns (log_probs (1,O), hidden (1,1,H), attn_weights (1,L))."""
    out, hid_seq, attn_w = attn_decoder_decode(
        jnp.asarray(token).reshape(1), hidden, encoder_outputs, p)
    return out, hid_seq[-1].reshape(1, 1, p["H"]), attn_w


def _reference(token, hidden, enc, torch_params):
    """Pure-JAX reference of one forward step (PyTorch weight layout)."""
    emb, Wa, ba, Wc, bc, Wih, Whh, bih, bhh, Wout, bout = torch_params
    H = hidden.shape[-1]
    x = emb[token]                                   # (1, H)
    y = hidden.reshape(1, H)
    logits = jnp.concatenate([x, y], axis=1) @ Wa.T + ba
    attn_w = jax.nn.softmax(logits, axis=1)
    attn_applied = attn_w @ enc
    comb = jnp.concatenate([x, attn_applied], axis=1) @ Wc.T + bc
    g = jax.nn.relu(comb)
    gx = g @ Wih.T + bih
    gh = y @ Whh.T + bhh
    r = jax.nn.sigmoid(gx[:, :H] + gh[:, :H])
    z = jax.nn.sigmoid(gx[:, H:2 * H] + gh[:, H:2 * H])
    n = jnp.tanh(gx[:, 2 * H:] + r * gh[:, 2 * H:])
    h_new = (1.0 - z) * n + z * y
    out = jax.nn.log_softmax(h_new @ Wout.T + bout, axis=1)
    return out, h_new[None], attn_w


def _reference_decode(tokens, hidden, enc, torch_params):
    outs, hids, attns = [], [], []
    h = hidden
    for t in range(tokens.shape[0]):
        o, h, a = _reference(tokens[t:t + 1], h, enc, torch_params)
        outs.append(o)
        hids.append(h.reshape(1, -1))
        attns.append(a)
    return (jnp.concatenate(outs, axis=0),
            jnp.concatenate(hids, axis=0),
            jnp.concatenate(attns, axis=0))


if __name__ == "__main__":
    H = HIDDEN                       # 128 (matches WeightsN2's 128 columns)
    O = 128                          # output vocabulary size (lane-dense choice)
    L = INPUT_LENGTH * MAX_LENGTH    # 250 attention positions
    V = 12                           # 11 pretrained embedding rows + 1 appended zero row
    T = 8                            # small decode length for the test

    key = jax.random.PRNGKey(0)
    ks = jax.random.split(key, 14)

    # Deterministic synthetic parameters (shapes dictated by the module's __init__).
    emb = jnp.concatenate([jax.random.normal(ks[0], (V - 1, H), jnp.float32),
                           jnp.zeros((1, H), jnp.float32)], axis=0)      # (V, H)
    b_a = 1.0 / (2 * H) ** 0.5
    Wa = jax.random.uniform(ks[1], (L, 2 * H), jnp.float32, -b_a, b_a)   # attn.weight
    ba = jax.random.uniform(ks[2], (L,), jnp.float32, -b_a, b_a)
    Wc = jax.random.uniform(ks[3], (H, 2 * H), jnp.float32, -b_a, b_a)   # attn_combine.weight
    bc = jax.random.uniform(ks[4], (H,), jnp.float32, -b_a, b_a)
    b_h = 1.0 / H ** 0.5
    Wih = jax.random.uniform(ks[5], (3 * H, H), jnp.float32, -b_h, b_h)  # gru.weight_ih_l0
    Whh = jax.random.uniform(ks[6], (3 * H, H), jnp.float32, -b_h, b_h)  # gru.weight_hh_l0
    bih = jax.random.uniform(ks[7], (3 * H,), jnp.float32, -b_h, b_h)
    bhh = jax.random.uniform(ks[8], (3 * H,), jnp.float32, -b_h, b_h)
    Wout = jax.random.uniform(ks[9], (O, H), jnp.float32, -b_h, b_h)     # out.weight
    bout = jax.random.uniform(ks[10], (O,), jnp.float32, -b_h, b_h)

    tokens = jax.random.randint(ks[11], (T,), 0, V).astype(jnp.int32)    # teacher-forced ids
    hidden0 = jnp.tanh(jax.random.normal(ks[12], (1, 1, H), jnp.float32))
    enc_out = jax.random.normal(ks[13], (L, H), jnp.float32)             # encoder_outputs

    torch_params = (emb, Wa, ba, Wc, bc, Wih, Whh, bih, bhh, Wout, bout)
    params = prepare_params(torch_params)

    # --- fused multi-step decode (one pallas_call for all T steps) ---
    out_seq, hid_seq, attn_seq = attn_decoder_decode(tokens, hidden0, enc_out, params)
    jax.block_until_ready((out_seq, hid_seq, attn_seq))

    ref_out, ref_hid, ref_attn = _reference_decode(tokens, hidden0, enc_out, torch_params)
    assert out_seq.shape == (T, O) and hid_seq.shape == (T, H) and attn_seq.shape == (T, L)
    assert jnp.allclose(out_seq, ref_out, atol=2e-4), float(jnp.abs(out_seq - ref_out).max())
    assert jnp.allclose(hid_seq, ref_hid, atol=2e-4), float(jnp.abs(hid_seq - ref_hid).max())
    assert jnp.allclose(attn_seq, ref_attn, atol=2e-5), float(jnp.abs(attn_seq - ref_attn).max())

    # --- single-step path (module-faithful signature) ---
    out1, hid1, attn1 = attn_decoder_forward(tokens[:1], hidden0, enc_out, params)
    jax.block_until_ready((out1, hid1, attn1))
    r_out1, r_hid1, r_attn1 = _reference(tokens[:1], hidden0, enc_out, torch_params)
    assert out1.shape == (1, O) and hid1.shape == (1, 1, H) and attn1.shape == (1, L)
    assert jnp.allclose(out1, r_out1, atol=1e-4), float(jnp.abs(out1 - r_out1).max())
    assert jnp.allclose(hid1, r_hid1, atol=1e-4), float(jnp.abs(hid1 - r_hid1).max())
    assert jnp.allclose(attn1, r_attn1, atol=1e-5), float(jnp.abs(attn1 - r_attn1).max())

    print("KERNEL_OK")
</pallas_src>

<mosaic_0001>
module attributes {stable_mosaic.version = 11 : i64} {
  func.func @kernel(%arg0: i32, %arg1: memref<8xi32, #tpu.memory_space<smem>>, %arg2: memref<12x128xf32, #tpu.memory_space<vmem>>, %arg3: memref<1x128xf32, #tpu.memory_space<vmem>>, %arg4: memref<256x128xf32, #tpu.memory_space<vmem>>, %arg5: memref<256x768xf32, #tpu.memory_space<vmem>>, %arg6: memref<1x256xf32, #tpu.memory_space<vmem>>, %arg7: memref<1x128xf32, #tpu.memory_space<vmem>>, %arg8: memref<128x384xf32, #tpu.memory_space<vmem>>, %arg9: memref<1x384xf32, #tpu.memory_space<vmem>>, %arg10: memref<1x384xf32, #tpu.memory_space<vmem>>, %arg11: memref<128x128xf32, #tpu.memory_space<vmem>>, %arg12: memref<1x128xf32, #tpu.memory_space<vmem>>, %arg13: memref<1x1x128xf32, #tpu.memory_space<vmem>>, %arg14: memref<1x1x256xf32, #tpu.memory_space<vmem>>, %arg15: memref<1x1x128xf32, #tpu.memory_space<vmem>>, %arg16: memref<1x128xf32, #tpu.memory_space<vmem>>) attributes {dimension_semantics = [#tpu.dimension_semantics<arbitrary>], iteration_bounds = array<i64: 8>, scalar_prefetch = 1 : i64, scratch_operands = 1 : i64, tpu.core_type = #tpu.core_type<tc>, window_params = [{pipeline_mode = #tpu.pipeline_mode<synchronous>, transform_indices = @transform_0, window_bounds = array<i64: 12, 128>}, {pipeline_mode = #tpu.pipeline_mode<synchronous>, transform_indices = @transform_1, window_bounds = array<i64: 1, 128>}, {pipeline_mode = #tpu.pipeline_mode<synchronous>, transform_indices = @transform_2, window_bounds = array<i64: 256, 128>}, {pipeline_mode = #tpu.pipeline_mode<synchronous>, transform_indices = @transform_3, window_bounds = array<i64: 256, 768>}, {pipeline_mode = #tpu.pipeline_mode<synchronous>, transform_indices = @transform_4, window_bounds = array<i64: 1, 256>}, {pipeline_mode = #tpu.pipeline_mode<synchronous>, transform_indices = @transform_5, window_bounds = array<i64: 1, 128>}, {pipeline_mode = #tpu.pipeline_mode<synchronous>, transform_indices = @transform_6, window_bounds = array<i64: 128, 384>}, {pipeline_mode = #tpu.pipeline_mode<synchronous>, transform_indices = @transform_7, window_bounds = array<i64: 1, 384>}, {pipeline_mode = #tpu.pipeline_mode<synchronous>, transform_indices = @transform_8, window_bounds = array<i64: 1, 384>}, {pipeline_mode = #tpu.pipeline_mode<synchronous>, transform_indices = @transform_9, window_bounds = array<i64: 128, 128>}, {pipeline_mode = #tpu.pipeline_mode<synchronous>, transform_indices = @transform_10, window_bounds = array<i64: 1, 128>}, {transform_indices = @transform_11, window_bounds = array<i64: 1, 1, 128>}, {transform_indices = @transform_12, window_bounds = array<i64: 1, 1, 256>}, {transform_indices = @transform_13, window_bounds = array<i64: 1, 1, 128>}]} {
    %c0_i32 = arith.constant 0 : i32
    %0 = arith.cmpi eq, %arg0, %c0_i32 : i32
    %1 = arith.extui %0 : i1 to i32
    %c0_i32_0 = arith.constant 0 : i32
    %2 = arith.cmpi ne, %1, %c0_i32_0 : i32
    scf.if %2 {
      %c0_43 = arith.constant 0 : index
      %c0_44 = arith.constant 0 : index
      %92 = vector.load %arg3[%c0_43, %c0_44] : memref<1x128xf32, #tpu.memory_space<vmem>>, vector<1x128xf32>
      %c0_45 = arith.constant 0 : index
      %c0_46 = arith.constant 0 : index
      %93 = vector.load %arg16[%c0_45, %c0_46] : memref<1x128xf32, #tpu.memory_space<vmem>>, vector<1x128xf32>
      tpu.vector_store %arg16[%c0_45, %c0_46], %92 {strides = array<i32>} : memref<1x128xf32, #tpu.memory_space<vmem>>, vector<1x128xf32>,
    } else {
    }
    %3 = arith.index_cast %arg0 : i32 to index
    %4 = memref.load %arg1[%3] : memref<8xi32, #tpu.memory_space<smem>>
    %5 = arith.index_cast %4 : i32 to index
    %c0 = arith.constant 0 : index
    %6 = vector.load %arg2[%5, %c0] : memref<12x128xf32, #tpu.memory_space<vmem>>, vector<1x128xf32>
    %c0_1 = arith.constant 0 : index
    %c0_2 = arith.constant 0 : index
    %7 = vector.load %arg16[%c0_1, %c0_2] : memref<1x128xf32, #tpu.memory_space<vmem>>, vector<1x128xf32>
    %8 = tpu.concatenate %6, %7 in 1 : vector<1x128xf32>, vector<1x128xf32> -> vector<1x256xf32>
    %c0_3 = arith.constant 0 : index
    %c0_4 = arith.constant 0 : index
    %9 = vector.load %arg5[%c0_3, %c0_4] : memref<256x768xf32, #tpu.memory_space<vmem>>, vector<256x768xf32>
    %cst = arith.constant dense<0.000000e+00> : vector<1x768xf32>
    %10 = tpu.matmul %8, %9, %cst {dimension_numbers = #tpu.dot_dimension_numbers<[1], [0], [0], [1], [0, 0, 1, 1], [], []>} : vector<1x256xf32>, vector<256x768xf32>, vector<1x768xf32> -> vector<1x768xf32>
    %11 = vector.extract_strided_slice %10 {offsets = [0, 0], sizes = [1, 256], strides = [1, 1]} : vector<1x768xf32> to vector<1x256xf32>
    %12 = vector.extract_strided_slice %10 {offsets = [0, 256], sizes = [1, 128], strides = [1, 1]} : vector<1x768xf32> to vector<1x128xf32>
    %13 = vector.extract_strided_slice %10 {offsets = [0, 384], sizes = [1, 384], strides = [1, 1]} : vector<1x768xf32> to vector<1x384xf32>
    %c0_5 = arith.constant 0 : index
    %c0_6 = arith.constant 0 : index
    %14 = vector.load %arg6[%c0_5, %c0_6] : memref<1x256xf32, #tpu.memory_space<vmem>>, vector<1x256xf32>
    %15 = arith.addf %11, %14 : vector<1x256xf32>
    %cst_7 = arith.constant dense<0xFF800000> : vector<1xf32>
    %16 = vector.multi_reduction <maximumf>, %15, %cst_7 [1] : vector<1x256xf32> to vector<1xf32>
    %17 = vector.shape_cast %16 : vector<1xf32> to vector<1x1xf32>
    %18 = vector.broadcast %17 : vector<1x1xf32> to vector<1x256xf32>
    %19 = arith.subf %15, %18 : vector<1x256xf32>
    %20 = math.exp %19 : vector<1x256xf32>
    %cst_8 = arith.constant dense<0.000000e+00> : vector<1xf32>
    %21 = vector.multi_reduction <add>, %20, %cst_8 [1] : vector<1x256xf32> to vector<1xf32>
    %22 = vector.shape_cast %21 : vector<1xf32> to vector<1x1xf32>
    %23 = tpu.reciprocal %22 : vector<1x1xf32> -> vector<1x1xf32>
    %24 = vector.broadcast %23 : vector<1x1xf32> to vector<1x256xf32>
    %25 = arith.mulf %20, %24 : vector<1x256xf32>
    %c0_9 = arith.constant 0 : index
    %c0_10 = arith.constant 0 : index
    %c0_11 = arith.constant 0 : index
    %26 = vector.load %arg14[%c0_9, %c0_10, %c0_11] : memref<1x1x256xf32, #tpu.memory_space<vmem>>, vector<1x1x256xf32>
    %27 = vector.shape_cast %26 : vector<1x1x256xf32> to vector<1x256xf32>
    %28 = vector.shape_cast %25 : vector<1x256xf32> to vector<1x1x256xf32>
    tpu.vector_store %arg14[%c0_9, %c0_10, %c0_11], %28 {strides = array<i32>} : memref<1x1x256xf32, #tpu.memory_space<vmem>>, vector<1x1x256xf32>,
    %c0_12 = arith.constant 0 : index
    %c0_13 = arith.constant 0 : index
    %29 = vector.load %arg4[%c0_12, %c0_13] : memref<256x128xf32, #tpu.memory_space<vmem>>, vector<256x128xf32>
    %cst_14 = arith.constant dense<0.000000e+00> : vector<1x128xf32>
    %30 = tpu.matmul %20, %29, %cst_14 {dimension_numbers = #tpu.dot_dimension_numbers<[1], [0], [0], [1], [0, 0, 1, 1], [], []>} : vector<1x256xf32>, vector<256x128xf32>, vector<1x128xf32> -> vector<1x128xf32>
    %31 = vector.broadcast %23 : vector<1x1xf32> to vector<1x128xf32>
    %32 = arith.mulf %30, %31 : vector<1x128xf32>
    %33 = arith.addf %12, %32 : vector<1x128xf32>
    %c0_15 = arith.constant 0 : index
    %c0_16 = arith.constant 0 : index
    %34 = vector.load %arg7[%c0_15, %c0_16] : memref<1x128xf32, #tpu.memory_space<vmem>>, vector<1x128xf32>
    %35 = arith.addf %33, %34 : vector<1x128xf32>
    %cst_17 = arith.constant 0.000000e+00 : f32
    %36 = vector.broadcast %cst_17 : f32 to vector<1x128xf32>
    %37 = arith.maximumf %35, %36 : vector<1x128xf32>
    %c0_18 = arith.constant 0 : index
    %c0_19 = arith.constant 0 : index
    %38 = vector.load %arg8[%c0_18, %c0_19] : memref<128x384xf32, #tpu.memory_space<vmem>>, vector<128x384xf32>
    %cst_20 = arith.constant dense<0.000000e+00> : vector<1x384xf32>
    %39 = tpu.matmul %37, %38, %cst_20 {dimension_numbers = #tpu.dot_dimension_numbers<[1], [0], [0], [1], [0, 0, 1, 1], [], []>} : vector<1x128xf32>, vector<128x384xf32>, vector<1x384xf32> -> vector<1x384xf32>
    %c0_21 = arith.constant 0 : index
    %c0_22 = arith.constant 0 : index
    %40 = vector.load %arg9[%c0_21, %c0_22] : memref<1x384xf32, #tpu.memory_space<vmem>>, vector<1x384xf32>
    %41 = arith.addf %39, %40 : vector<1x384xf32>
    %c0_23 = arith.constant 0 : index
    %c0_24 = arith.constant 0 : index
    %42 = vector.load %arg10[%c0_23, %c0_24] : memref<1x384xf32, #tpu.memory_space<vmem>>, vector<1x384xf32>
    %43 = arith.addf %13, %42 : vector<1x384xf32>
    %44 = vector.extract_strided_slice %41 {offsets = [0, 0], sizes = [1, 128], strides = [1, 1]} : vector<1x384xf32> to vector<1x128xf32>
    %45 = vector.extract_strided_slice %43 {offsets = [0, 0], sizes = [1, 128], strides = [1, 1]} : vector<1x384xf32> to vector<1x128xf32>
    %46 = arith.addf %44, %45 : vector<1x128xf32>
    %47 = arith.negf %46 : vector<1x128xf32>
    %48 = math.exp %47 : vector<1x128xf32>
    %cst_25 = arith.constant 1.000000e+00 : f32
    %49 = vector.broadcast %cst_25 : f32 to vector<1x128xf32>
    %50 = arith.addf %49, %48 : vector<1x128xf32>
    %51 = arith.divf %49, %50 : vector<1x128xf32>
    %52 = vector.extract_strided_slice %41 {offsets = [0, 128], sizes = [1, 128], strides = [1, 1]} : vector<1x384xf32> to vector<1x128xf32>
    %53 = vector.extract_strided_slice %43 {offsets = [0, 128], sizes = [1, 128], strides = [1, 1]} : vector<1x384xf32> to vector<1x128xf32>
    %54 = arith.addf %52, %53 : vector<1x128xf32>
    %55 = arith.negf %54 : vector<1x128xf32>
    %56 = math.exp %55 : vector<1x128xf32>
    %cst_26 = arith.constant 1.000000e+00 : f32
    %57 = vector.broadcast %cst_26 : f32 to vector<1x128xf32>
    %58 = arith.addf %57, %56 : vector<1x128xf32>
    %59 = arith.divf %57, %58 : vector<1x128xf32>
    %60 = vector.extract_strided_slice %41 {offsets = [0, 256], sizes = [1, 128], strides = [1, 1]} : vector<1x384xf32> to vector<1x128xf32>
    %61 = vector.extract_strided_slice %43 {offsets = [0, 256], sizes = [1, 128], strides = [1, 1]} : vector<1x384xf32> to vector<1x128xf32>
    %62 = arith.mulf %51, %61 : vector<1x128xf32>
    %63 = arith.addf %60, %62 : vector<1x128xf32>
    %64 = math.tanh %63 : vector<1x128xf32>
    %cst_27 = arith.constant 1.000000e+00 : f32
    %65 = vector.broadcast %cst_27 : f32 to vector<1x128xf32>
    %66 = arith.subf %65, %59 : vector<1x128xf32>
    %67 = arith.mulf %66, %64 : vector<1x128xf32>
    %68 = arith.mulf %59, %7 : vector<1x128xf32>
    %69 = arith.addf %67, %68 : vector<1x128xf32>
    %c0_28 = arith.constant 0 : index
    %c0_29 = arith.constant 0 : index
    %70 = vector.load %arg16[%c0_28, %c0_29] : memref<1x128xf32, #tpu.memory_space<vmem>>, vector<1x128xf32>
    tpu.vector_store %arg16[%c0_28, %c0_29], %69 {strides = array<i32>} : memref<1x128xf32, #tpu.memory_space<vmem>>, vector<1x128xf32>,
    %c0_30 = arith.constant 0 : index
    %c0_31 = arith.constant 0 : index
    %c0_32 = arith.constant 0 : index
    %71 = vector.load %arg15[%c0_30, %c0_31, %c0_32] : memref<1x1x128xf32, #tpu.memory_space<vmem>>, vector<1x1x128xf32>
    %72 = vector.shape_cast %71 : vector<1x1x128xf32> to vector<1x128xf32>
    %73 = vector.shape_cast %69 : vector<1x128xf32> to vector<1x1x128xf32>
    tpu.vector_store %arg15[%c0_30, %c0_31, %c0_32], %73 {strides = array<i32>} : memref<1x1x128xf32, #tpu.memory_space<vmem>>, vector<1x1x128xf32>,
    %c0_33 = arith.constant 0 : index
    %c0_34 = arith.constant 0 : index
    %74 = vector.load %arg11[%c0_33, %c0_34] : memref<128x128xf32, #tpu.memory_space<vmem>>, vector<128x128xf32>
    %cst_35 = arith.constant dense<0.000000e+00> : vector<1x128xf32>
    %75 = tpu.matmul %69, %74, %cst_35 {dimension_numbers = #tpu.dot_dimension_numbers<[1], [0], [0], [1], [0, 0, 1, 1], [], []>} : vector<1x128xf32>, vector<128x128xf32>, vector<1x128xf32> -> vector<1x128xf32>
    %c0_36 = arith.constant 0 : index
    %c0_37 = arith.constant 0 : index
    %76 = vector.load %arg12[%c0_36, %c0_37] : memref<1x128xf32, #tpu.memory_space<vmem>>, vector<1x128xf32>
    %77 = arith.addf %75, %76 : vector<1x128xf32>
    %cst_38 = arith.constant dense<0xFF800000> : vector<1xf32>
    %78 = vector.multi_reduction <maximumf>, %77, %cst_38 [1] : vector<1x128xf32> to vector<1xf32>
    %79 = vector.shape_cast %78 : vector<1xf32> to vector<1x1xf32>
    %80 = vector.broadcast %79 : vector<1x1xf32> to vector<1x128xf32>
    %81 = arith.subf %77, %80 : vector<1x128xf32>
    %82 = math.exp %81 : vector<1x128xf32>
    %cst_39 = arith.constant dense<0.000000e+00> : vector<1xf32>
    %83 = vector.multi_reduction <add>, %82, %cst_39 [1] : vector<1x128xf32> to vector<1xf32>
    %84 = vector.shape_cast %83 : vector<1xf32> to vector<1x1xf32>
    %85 = math.log %84 : vector<1x1xf32>
    %86 = arith.addf %85, %79 : vector<1x1xf32>
    %87 = vector.broadcast %86 : vector<1x1xf32> to vector<1x128xf32>
    %88 = arith.subf %77, %87 : vector<1x128xf32>
    %c0_40 = arith.constant 0 : index
    %c0_41 = arith.constant 0 : index
    %c0_42 = arith.constant 0 : index
    %89 = vector.load %arg13[%c0_40, %c0_41, %c0_42] : memref<1x1x128xf32, #tpu.memory_space<vmem>>, vector<1x1x128xf32>
    %90 = vector.shape_cast %89 : vector<1x1x128xf32> to vector<1x128xf32>
    %91 = vector.shape_cast %88 : vector<1x128xf32> to vector<1x1x128xf32>
    tpu.vector_store %arg13[%c0_40, %c0_41, %c0_42], %91 {strides = array<i32>} : memref<1x1x128xf32, #tpu.memory_space<vmem>>, vector<1x1x128xf32>,
    return
  }
  func.func @transform_0(%arg0: i32, %arg1: memref<8xi32, #tpu.memory_space<smem>>) -> (i32, i32) {
    %c0_i32 = arith.constant 0 : i32
    %c0_i32_0 = arith.constant 0 : i32
    %c0_i32_1 = arith.constant 0 : i32
    return %c0_i32, %c0_i32_0 : i32, i32
  }
  func.func @transform_1(%arg0: i32, %arg1: memref<8xi32, #tpu.memory_space<smem>>) -> (i32, i32) {
    %c0_i32 = arith.constant 0 : i32
    %c0_i32_0 = arith.constant 0 : i32
    %c0_i32_1 = arith.constant 0 : i32
    return %c0_i32, %c0_i32_0 : i32, i32
  }
  func.func @transform_2(%arg0: i32, %arg1: memref<8xi32, #tpu.memory_space<smem>>) -> (i32, i32) {
    %c0_i32 = arith.constant 0 : i32
    %c0_i32_0 = arith.constant 0 : i32
    %c0_i32_1 = arith.constant 0 : i32
    return %c0_i32, %c0_i32_0 : i32, i32
  }
  func.func @transform_3(%arg0: i32, %arg1: memref<8xi32, #tpu.memory_space<smem>>) -> (i32, i32) {
    %c0_i32 = arith.constant 0 : i32
    %c0_i32_0 = arith.constant 0 : i32
    %c0_i32_1 = arith.constant 0 : i32
    return %c0_i32, %c0_i32_0 : i32, i32
  }
  func.func @transform_4(%arg0: i32, %arg1: memref<8xi32, #tpu.memory_space<smem>>) -> (i32, i32) {
    %c0_i32 = arith.constant 0 : i32
    %c0_i32_0 = arith.constant 0 : i32
    %c0_i32_1 = arith.constant 0 : i32
    return %c0_i32, %c0_i32_0 : i32, i32
  }
  func.func @transform_5(%arg0: i32, %arg1: memref<8xi32, #tpu.memory_space<smem>>) -> (i32, i32) {
    %c0_i32 = arith.constant 0 : i32
    %c0_i32_0 = arith.constant 0 : i32
    %c0_i32_1 = arith.constant 0 : i32
    return %c0_i32, %c0_i32_0 : i32, i32
  }
  func.func @transform_6(%arg0: i32, %arg1: memref<8xi32, #tpu.memory_space<smem>>) -> (i32, i32) {
    %c0_i32 = arith.constant 0 : i32
    %c0_i32_0 = arith.constant 0 : i32
    %c0_i32_1 = arith.constant 0 : i32
    return %c0_i32, %c0_i32_0 : i32, i32
  }
  func.func @transform_7(%arg0: i32, %arg1: memref<8xi32, #tpu.memory_space<smem>>) -> (i32, i32) {
    %c0_i32 = arith.constant 0 : i32
    %c0_i32_0 = arith.constant 0 : i32
    %c0_i32_1 = arith.constant 0 : i32
    return %c0_i32, %c0_i32_0 : i32, i32
  }
  func.func @transform_8(%arg0: i32, %arg1: memref<8xi32, #tpu.memory_space<smem>>) -> (i32, i32) {
    %c0_i32 = arith.constant 0 : i32
    %c0_i32_0 = arith.constant 0 : i32
    %c0_i32_1 = arith.constant 0 : i32
    return %c0_i32, %c0_i32_0 : i32, i32
  }
  func.func @transform_9(%arg0: i32, %arg1: memref<8xi32, #tpu.memory_space<smem>>) -> (i32, i32) {
    %c0_i32 = arith.constant 0 : i32
    %c0_i32_0 = arith.constant 0 : i32
    %c0_i32_1 = arith.constant 0 : i32
    return %c0_i32, %c0_i32_0 : i32, i32
  }
  func.func @transform_10(%arg0: i32, %arg1: memref<8xi32, #tpu.memory_space<smem>>) -> (i32, i32) {
    %c0_i32 = arith.constant 0 : i32
    %c0_i32_0 = arith.constant 0 : i32
    %c0_i32_1 = arith.constant 0 : i32
    return %c0_i32, %c0_i32_0 : i32, i32
  }
  func.func @transform_11(%arg0: i32, %arg1: memref<8xi32, #tpu.memory_space<smem>>) -> (i32, i32, i32) {
    %c0_i32 = arith.constant 0 : i32
    %c0_i32_0 = arith.constant 0 : i32
    %c0_i32_1 = arith.constant 0 : i32
    return %arg0, %c0_i32, %c0_i32_0 : i32, i32, i32
  }
  func.func @transform_12(%arg0: i32, %arg1: memref<8xi32, #tpu.memory_space<smem>>) -> (i32, i32, i32) {
    %c0_i32 = arith.constant 0 : i32
    %c0_i32_0 = arith.constant 0 : i32
    %c0_i32_1 = arith.constant 0 : i32
    return %arg0, %c0_i32, %c0_i32_0 : i32, i32, i32
  }
  func.func @transform_13(%arg0: i32, %arg1: memref<8xi32, #tpu.memory_space<smem>>) -> (i32, i32, i32) {
    %c0_i32 = arith.constant 0 : i32
    %c0_i32_0 = arith.constant 0 : i32
    %c0_i32_1 = arith.constant 0 : i32
    return %arg0, %c0_i32, %c0_i32_0 : i32, i32, i32
  }
}

</mosaic_0001>

<llo_original>
// kernel: tpu_custom_call.1
$region0: #{tpu_custom_call.1}
  #allocation0 [shape = 'u32[]', space=smem, size = 0x4, offset = 0x4, fixed_abs, tag = 'smem constant byte address 0x4 - core index']
  #allocation1 [shape = 'u32[144,128]{1,0:T(1,128)}', space=vmem, size = 0x12000, scoped, tag = 'internal scratch']
  #allocation2 [shape = 'f32[1,128]{1,0:T(1,128)}', space=vmem, size = 0x200, scoped, tag = 'scratch operand']
  #allocation3 [shape = 's32[1]{0}', space=sflag, size = 0x4, scoped, tag = 'scoped memory for tpu_custom_call.1']
  #allocation4 [shape = 'u8[512]{0}', space=smem, size = 0x200, scoped, tag = 'prefetched SMEM operand 0']
  %s0 = inlined_call_operand.hbm [shape: s32[8], index: 0, kind: input, shape index: {}]
  %s1 = inlined_call_operand.hbm [shape: f32[12,128], index: 1, kind: input, shape index: {}]
  %s2 = inlined_call_operand.vmem [shape: f32[1,128], index: 2, kind: input, shape index: {}]
  %s3 = inlined_call_operand.hbm [shape: f32[256,128], index: 3, kind: input, shape index: {}]
  %s4 = inlined_call_operand.hbm [shape: f32[256,768], index: 4, kind: input, shape index: {}]
  %s5 = inlined_call_operand.vmem [shape: f32[1,256], index: 5, kind: input, shape index: {}]
  %s6 = inlined_call_operand.vmem [shape: f32[1,128], index: 6, kind: input, shape index: {}]
  %s7 = inlined_call_operand.hbm [shape: f32[128,384], index: 7, kind: input, shape index: {}]
  %s8 = inlined_call_operand.vmem [shape: f32[1,384], index: 8, kind: input, shape index: {}]
  %s9 = inlined_call_operand.vmem [shape: f32[1,384], index: 9, kind: input, shape index: {}]
  %s10 = inlined_call_operand.hbm [shape: f32[128,128], index: 10, kind: input, shape index: {}]
  %s11 = inlined_call_operand.vmem [shape: f32[1,128], index: 11, kind: input, shape index: {}]
  %s12 = inlined_call_operand.hbm [shape: f32[8,1,128], index: 12, kind: output, shape index: {0}]
  %s13 = inlined_call_operand.hbm [shape: f32[8,1,256], index: 13, kind: output, shape index: {1}]
  %s14 = inlined_call_operand.hbm [shape: f32[8,1,128], index: 14, kind: output, shape index: {2}]
  %15 = xla_tuple %s12, %s13, %s14
  %s16 = sld [smem:[#allocation0]]
  $region117: #{tpu_custom_call.1} parent=0
    _
  %s18 = ssub.s32 1, %s16
  %s19 = scalar_select 0, %s18, %s16
  %21 = dma.hbm_to_smem %s0, 16, [#allocation4], [#allocation3]
  %22 = dma.done [#allocation3], 16
  %23 = sfence
  $region1: #{tpu_custom_call.1} parent=0
    #allocation5 [shape = 'u8[8192]{0}', space=vmem, size = 0x2000, scoped, tag = 'input window, operand 1, single buffered']
    #allocation6 [shape = 's32[2]{0}', space=sflag, size = 0x8, scoped, tag = 'scoped memory for tpu_custom_call.1']
    #allocation7 [shape = 's32[2]{0}', space=sflag, size = 0x8, scoped, tag = 'scoped memory for tpu_custom_call.1']
    #allocation8 [shape = 'u8[131072]{0}', space=vmem, size = 0x20000, scoped, tag = 'input window, operand 3, single buffered']
    #allocation9 [shape = 's32[1]{0}', space=sflag, size = 0x4, scoped, tag = 'scoped memory for tpu_custom_call.1']
    #allocation10 [shape = 'u8[786432]{0}', space=vmem, size = 0xc0000, scoped, tag = 'input window, operand 4, single buffered']
    #allocation11 [shape = 'u8[196608]{0}', space=vmem, size = 0x30000, scoped, tag = 'input window, operand 7, single buffered']
    #allocation12 [shape = 's32[1]{0}', space=sflag, size = 0x4, scoped, tag = 'scoped memory for tpu_custom_call.1']
    #allocation13 [shape = 'u8[65536]{0}', space=vmem, size = 0x10000, scoped, tag = 'input window, operand 10, single buffered']
    #allocation14 [shape = 'u8[1024]{0}', space=vmem, size = 0x400, scoped, tag = 'output window, operand 0']
    #allocation15 [shape = 'u8[2048]{0}', space=vmem, size = 0x800, scoped, tag = 'output window, operand 1']
    #allocation16 [shape = 's32[2]{0}', space=sflag, size = 0x8, scoped, tag = 'scoped memory for tpu_custom_call.1']
    #allocation17 [shape = 'u8[1024]{0}', space=vmem, size = 0x400, scoped, tag = 'output window, operand 2']
    %24 = vsyncpa [#allocation6], 0
    %25 = vsyncpa [#allocation9], 0
    %26 = vsyncpa [#allocation12], 0
    %27 = vsyncpa [#allocation7], 0
    %s28 = scalar_lea.sflag [#allocation7], 1
    %29 = vsyncpa %s28, 0
    %30 = vsyncpa [#allocation16], 0
    %s31 = scalar_lea.sflag [#allocation16], 1
    %32 = vsyncpa %s31, 0
    loop: start=0, step=1, limit=10
    $region2: #{tpu_custom_call.1} parent=1 // loop_pre_header
      _
    $region3: #{tpu_custom_call.1} parent=1 // loop_header
      %s34 = sphi 0, %s38
      %p35 = scmp.ge.s32.totalorder %s34, 10
      %s42 = sphi 0, %s42
      %s44 = sphi 0, %s42
      %s45 = sphi 0, %s44
      %s59 = sphi 0, %s45
      %s63 = sphi 0, %s63
      %s65 = sphi 0, %s63
      %s66 = sphi 0, %s65
      %s80 = sphi 0, %s66
      %s84 = sphi 0, %s84
      %s86 = sphi 0, %s84
      %s87 = sphi 0, %s86
      %s101 = sphi 0, %s87
      %s105 = sphi 0, %s105
      %s107 = sphi 0, %s105
      %s108 = sphi 0, %s107
      %s122 = sphi 0, %s108
      %s126 = sphi 0, %s126
      %s128 = sphi 0, %s126
      %s129 = sphi 0, %s128
      %s143 = sphi 0, %s129
      %s147 = sphi 0, %s147
      %s149 = sphi 0, %s147
      %s150 = sphi 0, %s149
      %s164 = sphi 0, %s150
      %s168 = sphi 0, %s168
      %s170 = sphi 0, %s168
      %s171 = sphi 0, %s170
      %s185 = sphi 0, %s171
      %s189 = sphi 0, %s189
      %s191 = sphi 0, %s189
      %s192 = sphi 0, %s191
      %s206 = sphi 0, %s192
      %s210 = sphi 0, %s210
      %s212 = sphi 0, %s210
      %s213 = sphi 0, %s212
      %s227 = sphi 0, %s213
      %s231 = sphi 0, %s231
      %s233 = sphi 0, %s231
      %s234 = sphi 0, %s233
      %s248 = sphi 0, %s234
      %s252 = sphi 0, %s252
      %s254 = sphi 0, %s252
      %s255 = sphi 0, %s254
      %s269 = sphi 0, %s255
      %s275 = sphi 0, %s277
      %s278 = sphi 0, %s275
      %s279 = sphi 0, %s278
      %s295 = sphi 0, %s279
      %s301 = sphi 0, %s303
      %s304 = sphi 0, %s301
      %s305 = sphi 0, %s304
      %s321 = sphi 0, %s305
      %s327 = sphi 0, %s329
      %s330 = sphi 0, %s327
      %s331 = sphi 0, %s330
      %s347 = sphi 0, %s331
    $region4: #{tpu_custom_call.1} parent=1 // loop_header_branch
      %37 = sbr.rel (%p35) target = $region8
    $region5: #{tpu_custom_call.1} parent=1 // loop_body
      %s39 = ssub.s32 %s34, 1
      %s40 = ssub.s32 %s34, 2
      %s41 = sadd.s32 %s34, 1
      %s43 = sadd.s32 %s42, 1
      %p46 = scmp.eq.s32.totalorder %s34, 7
      %p47 = scmp.ne.s32.totalorder %s42, %s44
      %p48 = scmp.eq.s32.totalorder %s34, 0
      %p49 = por %p47, %p48
      %p50 = scmp.ne.s32.totalorder %s42, %s44
      %p51 = scmp.eq.s32.totalorder %s39, 7
      %p52 = por %p50, %p51
      %p53 = scmp.ne.s32.totalorder %s44, %s45
      %p54 = scmp.eq.s32.totalorder %s39, 0
      %p55 = por %p53, %p54
      %p56 = scmp.ne.s32.totalorder %s44, %s45
      %p57 = scmp.eq.s32.totalorder %s40, 7
      %p58 = por %p56, %p57
      %p60 = scmp.ne.s32.totalorder %s45, %s59
      %p61 = scmp.eq.s32.totalorder %s40, 0
      %p62 = por %p60, %p61
      %s64 = sadd.s32 %s63, 1
      %p67 = scmp.eq.s32.totalorder %s34, 7
      %p68 = scmp.ne.s32.totalorder %s63, %s65
      %p69 = scmp.eq.s32.totalorder %s34, 0
      %p70 = por %p68, %p69
      %p71 = scmp.ne.s32.totalorder %s63, %s65
      %p72 = scmp.eq.s32.totalorder %s39, 7
      %p73 = por %p71, %p72
      %p74 = scmp.ne.s32.totalorder %s65, %s66
      %p75 = scmp.eq.s32.totalorder %s39, 0
      %p76 = por %p74, %p75
      %p77 = scmp.ne.s32.totalorder %s65, %s66
      %p78 = scmp.eq.s32.totalorder %s40, 7
      %p79 = por %p77, %p78
      %p81 = scmp.ne.s32.totalorder %s66, %s80
      %p82 = scmp.eq.s32.totalorder %s40, 0
      %p83 = por %p81, %p82
      %s85 = sadd.s32 %s84, 1
      %p88 = scmp.eq.s32.totalorder %s34, 7
      %p89 = scmp.ne.s32.totalorder %s84, %s86
      %p90 = scmp.eq.s32.totalorder %s34, 0
      %p91 = por %p89, %p90
      %p92 = scmp.ne.s32.totalorder %s84, %s86
      %p93 = scmp.eq.s32.totalorder %s39, 7
      %p94 = por %p92, %p93
      %p95 = scmp.ne.s32.totalorder %s86, %s87
      %p96 = scmp.eq.s32.totalorder %s39, 0
      %p97 = por %p95, %p96
      %p98 = scmp.ne.s32.totalorder %s86, %s87
      %p99 = scmp.eq.s32.totalorder %s40, 7
      %p100 = por %p98, %p99
      %p102 = scmp.ne.s32.totalorder %s87, %s101
      %p103 = scmp.eq.s32.totalorder %s40, 0
      %p104 = por %p102, %p103
      %s106 = sadd.s32 %s105, 1
      %p109 = scmp.eq.s32.totalorder %s34, 7
      %p110 = scmp.ne.s32.totalorder %s105, %s107
      %p111 = scmp.eq.s32.totalorder %s34, 0
      %p112 = por %p110, %p111
      %p113 = scmp.ne.s32.totalorder %s105, %s107
      %p114 = scmp.eq.s32.totalorder %s39, 7
      %p115 = por %p113, %p114
      %p116 = scmp.ne.s32.totalorder %s107, %s108
      %p117 = scmp.eq.s32.totalorder %s39, 0
      %p118 = por %p116, %p117
      %p119 = scmp.ne.s32.totalorder %s107, %s108
      %p120 = scmp.eq.s32.totalorder %s40, 7
      %p121 = por %p119, %p120
      %p123 = scmp.ne.s32.totalorder %s108, %s122
      %p124 = scmp.eq.s32.totalorder %s40, 0
      %p125 = por %p123, %p124
      %s127 = sadd.s32 %s126, 1
      %p130 = scmp.eq.s32.totalorder %s34, 7
      %p131 = scmp.ne.s32.totalorder %s126, %s128
      %p132 = scmp.eq.s32.totalorder %s34, 0
      %p133 = por %p131, %p132
      %p134 = scmp.ne.s32.totalorder %s126, %s128
      %p135 = scmp.eq.s32.totalorder %s39, 7
      %p136 = por %p134, %p135
      %p137 = scmp.ne.s32.totalorder %s128, %s129
      %p138 = scmp.eq.s32.totalorder %s39, 0
      %p139 = por %p137, %p138
      %p140 = scmp.ne.s32.totalorder %s128, %s129
      %p141 = scmp.eq.s32.totalorder %s40, 7
      %p142 = por %p140, %p141
      %p144 = scmp.ne.s32.totalorder %s129, %s143
      %p145 = scmp.eq.s32.totalorder %s40, 0
      %p146 = por %p144, %p145
      %s148 = sadd.s32 %s147, 1
      %p151 = scmp.eq.s32.totalorder %s34, 7
      %p152 = scmp.ne.s32.totalorder %s147, %s149
      %p153 = scmp.eq.s32.totalorder %s34, 0
      %p154 = por %p152, %p153
      %p155 = scmp.ne.s32.totalorder %s147, %s149
      %p156 = scmp.eq.s32.totalorder %s39, 7
      %p157 = por %p155, %p156
      %p158 = scmp.ne.s32.totalorder %s149, %s150
      %p159 = scmp.eq.s32.totalorder %s39, 0
      %p160 = por %p158, %p159
      %p161 = scmp.ne.s32.totalorder %s149, %s150
      %p162 = scmp.eq.s32.totalorder %s40, 7
      %p163 = por %p161, %p162
      %p165 = scmp.ne.s32.totalorder %s150, %s164
      %p166 = scmp.eq.s32.totalorder %s40, 0
      %p167 = por %p165, %p166
      %s169 = sadd.s32 %s168, 1
      %p172 = scmp.eq.s32.totalorder %s34, 7
      %p173 = scmp.ne.s32.totalorder %s168, %s170
      %p174 = scmp.eq.s32.totalorder %s34, 0
      %p175 = por %p173, %p174
      %p176 = scmp.ne.s32.totalorder %s168, %s170
      %p177 = scmp.eq.s32.totalorder %s39, 7
      %p178 = por %p176, %p177
      %p179 = scmp.ne.s32.totalorder %s170, %s171
      %p180 = scmp.eq.s32.totalorder %s39, 0
      %p181 = por %p179, %p180
      %p182 = scmp.ne.s32.totalorder %s170, %s171
      %p183 = scmp.eq.s32.totalorder %s40, 7
      %p184 = por %p182, %p183
      %p186 = scmp.ne.s32.totalorder %s171, %s185
      %p187 = scmp.eq.s32.totalorder %s40, 0
      %p188 = por %p186, %p187
      %s190 = sadd.s32 %s189, 1
      %p193 = scmp.eq.s32.totalorder %s34, 7
      %p194 = scmp.ne.s32.totalorder %s189, %s191
      %p195 = scmp.eq.s32.totalorder %s34, 0
      %p196 = por %p194, %p195
      %p197 = scmp.ne.s32.totalorder %s189, %s191
      %p198 = scmp.eq.s32.totalorder %s39, 7
      %p199 = por %p197, %p198
      %p200 = scmp.ne.s32.totalorder %s191, %s192
      %p201 = scmp.eq.s32.totalorder %s39, 0
      %p202 = por %p200, %p201
      %p203 = scmp.ne.s32.totalorder %s191, %s192
      %p204 = scmp.eq.s32.totalorder %s40, 7
      %p205 = por %p203, %p204
      %p207 = scmp.ne.s32.totalorder %s192, %s206
      %p208 = scmp.eq.s32.totalorder %s40, 0
      %p209 = por %p207, %p208
      %s211 = sadd.s32 %s210, 1
      %p214 = scmp.eq.s32.totalorder %s34, 7
      %p215 = scmp.ne.s32.totalorder %s210, %s212
      %p216 = scmp.eq.s32.totalorder %s34, 0
      %p217 = por %p215, %p216
      %p218 = scmp.ne.s32.totalorder %s210, %s212
      %p219 = scmp.eq.s32.totalorder %s39, 7
      %p220 = por %p218, %p219
      %p221 = scmp.ne.s32.totalorder %s212, %s213
      %p222 = scmp.eq.s32.totalorder %s39, 0
      %p223 = por %p221, %p222
      %p224 = scmp.ne.s32.totalorder %s212, %s213
      %p225 = scmp.eq.s32.totalorder %s40, 7
      %p226 = por %p224, %p225
      %p228 = scmp.ne.s32.totalorder %s213, %s227
      %p229 = scmp.eq.s32.totalorder %s40, 0
      %p230 = por %p228, %p229
      %s232 = sadd.s32 %s231, 1
      %p235 = scmp.eq.s32.totalorder %s34, 7
      %p236 = scmp.ne.s32.totalorder %s231, %s233
      %p237 = scmp.eq.s32.totalorder %s34, 0
      %p238 = por %p236, %p237
      %p239 = scmp.ne.s32.totalorder %s231, %s233
      %p240 = scmp.eq.s32.totalorder %s39, 7
      %p241 = por %p239, %p240
      %p242 = scmp.ne.s32.totalorder %s233, %s234
      %p243 = scmp.eq.s32.totalorder %s39, 0
      %p244 = por %p242, %p243
      %p245 = scmp.ne.s32.totalorder %s233, %s234
      %p246 = scmp.eq.s32.totalorder %s40, 7
      %p247 = por %p245, %p246
      %p249 = scmp.ne.s32.totalorder %s234, %s248
      %p250 = scmp.eq.s32.totalorder %s40, 0
      %p251 = por %p249, %p250
      %s253 = sadd.s32 %s252, 1
      %p256 = scmp.eq.s32.totalorder %s34, 7
      %p257 = scmp.ne.s32.totalorder %s252, %s254
      %p258 = scmp.eq.s32.totalorder %s34, 0
      %p259 = por %p257, %p258
      %p260 = scmp.ne.s32.totalorder %s252, %s254
      %p261 = scmp.eq.s32.totalorder %s39, 7
      %p262 = por %p260, %p261
      %p263 = scmp.ne.s32.totalorder %s254, %s255
      %p264 = scmp.eq.s32.totalorder %s39, 0
      %p265 = por %p263, %p264
      %p266 = scmp.ne.s32.totalorder %s254, %s255
      %p267 = scmp.eq.s32.totalorder %s40, 7
      %p268 = por %p266, %p267
      %p270 = scmp.ne.s32.totalorder %s255, %s269
      %p271 = scmp.eq.s32.totalorder %s40, 0
      %p272 = por %p270, %p271
      %s273 = ssub.s32 %s34, %s41
      %p274 = scmp.eq.s32.totalorder %s273, 0
      %s276 = sadd.s32 %s275, 1
      %s277 = scalar_select %p274, %s275, %s276
      %p280 = pneg %p274
      %p281 = scmp.eq.s32.totalorder %s34, 7
      %p282 = por %p280, %p281
      %p283 = scmp.ne.s32.totalorder %s275, %s278
      %p284 = scmp.eq.s32.totalorder %s34, 0
      %p285 = por %p283, %p284
      %p286 = scmp.ne.s32.totalorder %s275, %s278
      %p287 = scmp.eq.s32.totalorder %s39, 7
      %p288 = por %p286, %p287
      %p289 = scmp.ne.s32.totalorder %s278, %s279
      %p290 = scmp.eq.s32.totalorder %s39, 0
      %p291 = por %p289, %p290
      %p292 = scmp.ne.s32.totalorder %s278, %s279
      %p293 = scmp.eq.s32.totalorder %s40, 7
      %p294 = por %p292, %p293
      %p296 = scmp.ne.s32.totalorder %s279, %s295
      %p297 = scmp.eq.s32.totalorder %s40, 0
      %p298 = por %p296, %p297
      %s299 = ssub.s32 %s34, %s41
      %p300 = scmp.eq.s32.totalorder %s299, 0
      %s302 = sadd.s32 %s301, 1
      %s303 = scalar_select %p300, %s301, %s302
      %p306 = pneg %p300
      %p307 = scmp.eq.s32.totalorder %s34, 7
      %p308 = por %p306, %p307
      %p309 = scmp.ne.s32.totalorder %s301, %s304
      %p310 = scmp.eq.s32.totalorder %s34, 0
      %p311 = por %p309, %p310
      %p312 = scmp.ne.s32.totalorder %s301, %s304
      %p313 = scmp.eq.s32.totalorder %s39, 7
      %p314 = por %p312, %p313
      %p315 = scmp.ne.s32.totalorder %s304, %s305
      %p316 = scmp.eq.s32.totalorder %s39, 0
      %p317 = por %p315, %p316
      %p318 = scmp.ne.s32.totalorder %s304, %s305
      %p319 = scmp.eq.s32.totalorder %s40, 7
      %p320 = por %p318, %p319
      %p322 = scmp.ne.s32.totalorder %s305, %s321
      %p323 = scmp.eq.s32.totalorder %s40, 0
      %p324 = por %p322, %p323
      %s325 = ssub.s32 %s34, %s41
      %p326 = scmp.eq.s32.totalorder %s325, 0
      %s328 = sadd.s32 %s327, 1
      %s329 = scalar_select %p326, %s327, %s328
      %p332 = pneg %p326
      %p333 = scmp.eq.s32.totalorder %s34, 7
      %p334 = por %p332, %p333
      %p335 = scmp.ne.s32.totalorder %s327, %s330
      %p336 = scmp.eq.s32.totalorder %s34, 0
      %p337 = por %p335, %p336
      %p338 = scmp.ne.s32.totalorder %s327, %s330
      %p339 = scmp.eq.s32.totalorder %s39, 7
      %p340 = por %p338, %p339
      %p341 = scmp.ne.s32.totalorder %s330, %s331
      %p342 = scmp.eq.s32.totalorder %s39, 0
      %p343 = por %p341, %p342
      %p344 = scmp.ne.s32.totalorder %s330, %s331
      %p345 = scmp.eq.s32.totalorder %s40, 7
      %p346 = por %p344, %p345
      %p348 = scmp.ne.s32.totalorder %s331, %s347
      %p349 = scmp.eq.s32.totalorder %s40, 0
      %p350 = por %p348, %p349
      %p351 = scmp.le.s32.totalorder 1, %s34
      %p352 = scmp.lt.s32.totalorder %s34, 9
      %p353 = pnand %p351, %p352
      %p354 = pneg %p353
      // Predicated region
      $region9: #{tpu_custom_call.1} parent=5 // pred_check
        _
      $region10: #{tpu_custom_call.1} parent=5 // pred_check_branch
        %356 = sbr.rel (%p353) target = $region12
      $region11: #{tpu_custom_call.1} parent=5 // pred_region
        %s357 = ssub.s32 %s34, 1
        // Predicated region
        $region13: #{tpu_custom_call.1} parent=11 // pred_check
          %p358 = pneg %p55
        $region14: #{tpu_custom_call.1} parent=11 // pred_check_branch
          %360 = sbr.rel (%p358) target = $region16
        $region15: #{tpu_custom_call.1} parent=11 // pred_region
          %s362 = ssub.s32 256, 256
          %363 = vsyncadd [#allocation6], %s362
          %s364 = sshll.u32 [#allocation5], 4
          %s365 = int_to_ptr.vmem [resolvable:$true] %s364
          %370 = dma.hbm_to_vmem [thread:$0]  %s1, 256, %s365, [#allocation6], 128, 128, 8
        $region16: #{tpu_custom_call.1} parent=11 // pred_fallthru
          _
        // Predicated region
        $region17: #{tpu_custom_call.1} parent=11 // pred_check
          %p371 = pneg %p76
        $region18: #{tpu_custom_call.1} parent=11 // pred_check_branch
          %373 = sbr.rel (%p371) target = $region20
        $region19: #{tpu_custom_call.1} parent=11 // pred_region
          _
        $region20: #{tpu_custom_call.1} parent=11 // pred_fallthru
          _
        // Predicated region
        $region21: #{tpu_custom_call.1} parent=11 // pred_check
          %p374 = pneg %p97
        $region22: #{tpu_custom_call.1} parent=11 // pred_check_branch
          %376 = sbr.rel (%p374) target = $region24
        $region23: #{tpu_custom_call.1} parent=11 // pred_region
          %s378 = ssub.s32 4096, 4096
          %379 = vsyncadd [#allocation9], %s378
          %s380 = sshll.u32 [#allocation8], 4
          %s381 = int_to_ptr.vmem [resolvable:$true] %s380
          %386 = dma.hbm_to_vmem [thread:$0]  %s3, 4096, %s381, [#allocation9], 128, 128, 8
        $region24: #{tpu_custom_call.1} parent=11 // pred_fallthru
          _
        // Predicated region
        $region25: #{tpu_custom_call.1} parent=11 // pred_check
          %p387 = pneg %p118
        $region26: #{tpu_custom_call.1} parent=11 // pred_check_branch
          %389 = sbr.rel (%p387) target = $region28
        $region27: #{tpu_custom_call.1} parent=11 // pred_region
          %s391 = ssub.s32 24576, 24576
          %392 = vsyncadd [#allocation9], %s391
          %s393 = sshll.u32 [#allocation10], 4
          %s394 = int_to_ptr.vmem [resolvable:$true] %s393
          %399 = dma.hbm_to_vmem [thread:$0]  %s4, 24576, %s394, [#allocation9], 768, 768, 48
        $region28: #{tpu_custom_call.1} parent=11 // pred_fallthru
          _
        // Predicated region
        $region29: #{tpu_custom_call.1} parent=11 // pred_check
          %p400 = pneg %p139
        $region30: #{tpu_custom_call.1} parent=11 // pred_check_branch
          %402 = sbr.rel (%p400) target = $region32
        $region31: #{tpu_custom_call.1} parent=11 // pred_region
          _
        $region32: #{tpu_custom_call.1} parent=11 // pred_fallthru
          _
        // Predicated region
        $region33: #{tpu_custom_call.1} parent=11 // pred_check
          %p403 = pneg %p160
        $region34: #{tpu_custom_call.1} parent=11 // pred_check_branch
          %405 = sbr.rel (%p403) target = $region36
        $region35: #{tpu_custom_call.1} parent=11 // pred_region
          _
        $region36: #{tpu_custom_call.1} parent=11 // pred_fallthru
          _
        // Predicated region
        $region37: #{tpu_custom_call.1} parent=11 // pred_check
          %p406 = pneg %p181
        $region38: #{tpu_custom_call.1} parent=11 // pred_check_branch
          %408 = sbr.rel (%p406) target = $region40
        $region39: #{tpu_custom_call.1} parent=11 // pred_region
          %s410 = ssub.s32 6144, 6144
          %411 = vsyncadd [#allocation12], %s410
          %s412 = sshll.u32 [#allocation11], 4
          %s413 = int_to_ptr.vmem [resolvable:$true] %s412
          %418 = dma.hbm_to_vmem [thread:$0]  %s7, 6144, %s413, [#allocation12], 384, 384, 24
        $region40: #{tpu_custom_call.1} parent=11 // pred_fallthru
          _
        // Predicated region
        $region41: #{tpu_custom_call.1} parent=11 // pred_check
          %p419 = pneg %p202
        $region42: #{tpu_custom_call.1} parent=11 // pred_check_branch
          %421 = sbr.rel (%p419) target = $region44
        $region43: #{tpu_custom_call.1} parent=11 // pred_region
          _
        $region44: #{tpu_custom_call.1} parent=11 // pred_fallthru
          _
        // Predicated region
        $region45: #{tpu_custom_call.1} parent=11 // pred_check
          %p422 = pneg %p223
        $region46: #{tpu_custom_call.1} parent=11 // pred_check_branch
          %424 = sbr.rel (%p422) target = $region48
        $region47: #{tpu_custom_call.1} parent=11 // pred_region
          _
        $region48: #{tpu_custom_call.1} parent=11 // pred_fallthru
          _
        // Predicated region
        $region49: #{tpu_custom_call.1} parent=11 // pred_check
          %p425 = pneg %p244
        $region50: #{tpu_custom_call.1} parent=11 // pred_check_branch
          %427 = sbr.rel (%p425) target = $region52
        $region51: #{tpu_custom_call.1} parent=11 // pred_region
          %s429 = ssub.s32 2048, 2048
          %430 = vsyncadd [#allocation12], %s429
          %s431 = sshll.u32 [#allocation13], 4
          %s432 = int_to_ptr.vmem [resolvable:$true] %s431
          %437 = dma.hbm_to_vmem [thread:$0]  %s10, 2048, %s432, [#allocation12], 128, 128, 8
        $region52: #{tpu_custom_call.1} parent=11 // pred_fallthru
          _
        // Predicated region
        $region53: #{tpu_custom_call.1} parent=11 // pred_check
          %p438 = pneg %p265
        $region54: #{tpu_custom_call.1} parent=11 // pred_check_branch
          %440 = sbr.rel (%p438) target = $region56
        $region55: #{tpu_custom_call.1} parent=11 // pred_region
          _
        $region56: #{tpu_custom_call.1} parent=11 // pred_fallthru
          _
      $region12: #{tpu_custom_call.1} parent=5 // pred_fallthru
        _
      %p441 = scmp.lt.s32.totalorder %s34, 8
      // Predicated region
      $region57: #{tpu_custom_call.1} parent=5 // pred_check
        %p442 = pneg %p441
      $region58: #{tpu_custom_call.1} parent=5 // pred_check_branch
        %444 = sbr.rel (%p442) target = $region60
      $region59: #{tpu_custom_call.1} parent=5 // pred_region
        _
      $region60: #{tpu_custom_call.1} parent=5 // pred_fallthru
        _
      %p445 = scmp.le.s32.totalorder 1, %s34
      %p446 = scmp.lt.s32.totalorder %s34, 9
      %p447 = pnand %p445, %p446
      %p448 = pneg %p447
      // Predicated region
      $region61: #{tpu_custom_call.1} parent=5 // pred_check
        _
      $region62: #{tpu_custom_call.1} parent=5 // pred_check_branch
        %450 = sbr.rel (%p447) target = $region64
      $region63: #{tpu_custom_call.1} parent=5 // pred_region
        %s451 = ssub.s32 %s34, 1
        // Predicated region
        $region65: #{tpu_custom_call.1} parent=63 // pred_check
          %p452 = pneg %p55
        $region66: #{tpu_custom_call.1} parent=63 // pred_check_branch
          %454 = sbr.rel (%p452) target = $region68
        $region67: #{tpu_custom_call.1} parent=63 // pred_region
          %455 = dma.done [#allocation6], 256
        $region68: #{tpu_custom_call.1} parent=63 // pred_fallthru
          _
        // Predicated region
        $region69: #{tpu_custom_call.1} parent=63 // pred_check
          %p456 = pneg %p97
        $region70: #{tpu_custom_call.1} parent=63 // pred_check_branch
          %458 = sbr.rel (%p456) target = $region72
        $region71: #{tpu_custom_call.1} parent=63 // pred_region
          %459 = dma.done [#allocation9], 4096
        $region72: #{tpu_custom_call.1} parent=63 // pred_fallthru
          _
        // Predicated region
        $region73: #{tpu_custom_call.1} parent=63 // pred_check
          %p460 = pneg %p118
        $region74: #{tpu_custom_call.1} parent=63 // pred_check_branch
          %462 = sbr.rel (%p460) target = $region76
        $region75: #{tpu_custom_call.1} parent=63 // pred_region
          %463 = dma.done [#allocation9], 24576
        $region76: #{tpu_custom_call.1} parent=63 // pred_fallthru
          _
        // Predicated region
        $region77: #{tpu_custom_call.1} parent=63 // pred_check
          %p464 = pneg %p181
        $region78: #{tpu_custom_call.1} parent=63 // pred_check_branch
          %466 = sbr.rel (%p464) target = $region80
        $region79: #{tpu_custom_call.1} parent=63 // pred_region
          %467 = dma.done [#allocation12], 6144
        $region80: #{tpu_custom_call.1} parent=63 // pred_fallthru
          _
        // Predicated region
        $region81: #{tpu_custom_call.1} parent=63 // pred_check
          %p468 = pneg %p244
        $region82: #{tpu_custom_call.1} parent=63 // pred_check_branch
          %470 = sbr.rel (%p468) target = $region84
        $region83: #{tpu_custom_call.1} parent=63 // pred_region
          %471 = dma.done [#allocation12], 2048
        $region84: #{tpu_custom_call.1} parent=63 // pred_fallthru
          _
        %p472 = pneg %p55
        %p473 = pneg %p52
        %p474 = pneg %p76
        %p475 = pneg %p73
        %p476 = pneg %p97
        %p477 = pneg %p94
        %p478 = pneg %p118
        %p479 = pneg %p115
        %p480 = pneg %p139
        %p481 = pneg %p136
        %p482 = pneg %p160
        %p483 = pneg %p157
        %p484 = pneg %p181
        %p485 = pneg %p178
        %p486 = pneg %p202
        %p487 = pneg %p199
        %p488 = pneg %p223
        %p489 = pneg %p220
        %p490 = pneg %p244
        %p491 = pneg %p241
        %p492 = pneg %p265
        %p493 = pneg %p262
        %p494 = pneg %p291
        %p495 = pneg %p288
        %s496 = sand.u32 %s278, 1
        %s497 = scalar_lea.sflag [#allocation7], %s496
        %s498 = sand.u32 %s278, 1
        %s499 = scalar_lea.vmem [#allocation14], %s498
        %p500 = pneg %p317
        %p501 = pneg %p314
        %s502 = sand.u32 %s39, 1
        %s503 = scalar_lea.sflag [#allocation16], %s502
        %s504 = sand.u32 %s304, 1
        %s505 = smul.addr %s504, 2
        %s506 = scalar_lea.vmem [#allocation15], %s505
        %p507 = pneg %p343
        %p508 = pneg %p340
        %s509 = sand.u32 %s39, 1
        %s510 = scalar_lea.sflag [#allocation16], %s509
        %s511 = sand.u32 %s330, 1
        %s512 = scalar_lea.vmem [#allocation17], %s511
        %p513 = scmp.eq.s32.totalorder %s39, 0
        // Predicated region
        $region85: #{tpu_custom_call.1} parent=63 // pred_check
          %p514 = pneg %p513
        $region86: #{tpu_custom_call.1} parent=63 // pred_check_branch
          %516 = sbr.rel (%p514) target = $region88
        $region87: #{tpu_custom_call.1} parent=63 // pred_region
          %v517 = vld [vmem:[%s2] sm:$0x1]
          %518 = vst [vmem:[#allocation2] sm:$0x1] %v517
        $region88: #{tpu_custom_call.1} parent=63 // pred_fallthru
          _
        %s519 = sld [smem:[#allocation4 + %s39]]
        %s520 = scalar_lea.vmem [#allocation5], %s519
        %v521 = vld [vmem:[%s520] sm:$0x1]
        %v522 = vld [vmem:[#allocation2] sm:$0x1]
        %v523 = vld [vmem:[#allocation10] sm:$0xff]
        %v524 = vld [vmem:[#allocation10 + $0x8] sm:$0xff]
        %v525 = vld [vmem:[#allocation10 + $0x10] sm:$0xff]
        %v526 = vld [vmem:[#allocation10 + $0x18] sm:$0xff]
        %v527 = vld [vmem:[#allocation10 + $0x20] sm:$0xff]
        %v528 = vld [vmem:[#allocation10 + $0x28] sm:$0xff]
        %v529 = vld [vmem:[#allocation10 + $0x30] sm:$0xff]
        %v530 = vld [vmem:[#allocation10 + $0x38] sm:$0xff]
        %v531 = vld [vmem:[#allocation10 + $0x40] sm:$0xff]
        %v532 = vld [vmem:[#allocation10 + $0x48] sm:$0xff]
        %v533 = vld [vmem:[#allocation10 + $0x50] sm:$0xff]
        %v534 = vld [vmem:[#allocation10 + $0x58] sm:$0xff]
        %v535 = vld [vmem:[#allocation10 + $0x60] sm:$0xff]
        %v536 = vld [vmem:[#allocation10 + $0x68] sm:$0xff]
        %v537 = vld [vmem:[#allocation10 + $0x70] sm:$0xff]
        %v538 = vld [vmem:[#allocation10 + $0x78] sm:$0xff]
        %v539 = vld [vmem:[#allocation10 + $0x80] sm:$0xff]
        %v540 = vld [vmem:[#allocation10 + $0x88] sm:$0xff]
        %v541 = vld [vmem:[#allocation10 + $0x90] sm:$0xff]
        %v542 = vld [vmem:[#allocation10 + $0x98] sm:$0xff]
        %v543 = vld [vmem:[#allocation10 + $0xa0] sm:$0xff]
        %v544 = vld [vmem:[#allocation10 + $0xa8] sm:$0xff]
        %v545 = vld [vmem:[#allocation10 + $0xb0] sm:$0xff]
        %v546 = vld [vmem:[#allocation10 + $0xb8] sm:$0xff]
        %v547 = vld [vmem:[#allocation10 + $0xc0] sm:$0xff]
        %v548 = vld [vmem:[#allocation10 + $0xc8] sm:$0xff]
        %v549 = vld [vmem:[#allocation10 + $0xd0] sm:$0xff]
        %v550 = vld [vmem:[#allocation10 + $0xd8] sm:$0xff]
        %v551 = vld [vmem:[#allocation10 + $0xe0] sm:$0xff]
        %v552 = vld [vmem:[#allocation10 + $0xe8] sm:$0xff]
        %v553 = vld [vmem:[#allocation10 + $0xf0] sm:$0xff]
        %v554 = vld [vmem:[#allocation10 + $0xf8] sm:$0xff]
        %v555 = vld [vmem:[#allocation10 + $0x100] sm:$0xff]
        %v556 = vld [vmem:[#allocation10 + $0x108] sm:$0xff]
        %v557 = vld [vmem:[#allocation10 + $0x110] sm:$0xff]
        %v558 = vld [vmem:[#allocation10 + $0x118] sm:$0xff]
        %v559 = vld [vmem:[#allocation10 + $0x120] sm:$0xff]
        %v560 = vld [vmem:[#allocation10 + $0x128] sm:$0xff]
        %v561 = vld [vmem:[#allocation10 + $0x130] sm:$0xff]
        %v562 = vld [vmem:[#allocation10 + $0x138] sm:$0xff]
        %v563 = vld [vmem:[#allocation10 + $0x140] sm:$0xff]
        %v564 = vld [vmem:[#allocation10 + $0x148] sm:$0xff]
        %v565 = vld [vmem:[#allocation10 + $0x150] sm:$0xff]
        %v566 = vld [vmem:[#allocation10 + $0x158] sm:$0xff]
        %v567 = vld [vmem:[#allocation10 + $0x160] sm:$0xff]
        %v568 = vld [vmem:[#allocation10 + $0x168] sm:$0xff]
        %v569 = vld [vmem:[#allocation10 + $0x170] sm:$0xff]
        %v570 = vld [vmem:[#allocation10 + $0x178] sm:$0xff]
        %v571 = vld [vmem:[#allocation10 + $0x180] sm:$0xff]
        %v572 = vld [vmem:[#allocation10 + $0x188] sm:$0xff]
        %v573 = vld [vmem:[#allocation10 + $0x190] sm:$0xff]
        %v574 = vld [vmem:[#allocation10 + $0x198] sm:$0xff]
        %v575 = vld [vmem:[#allocation10 + $0x1a0] sm:$0xff]
        %v576 = vld [vmem:[#allocation10 + $0x1a8] sm:$0xff]
        %v577 = vld [vmem:[#allocation10 + $0x1b0] sm:$0xff]
        %v578 = vld [vmem:[#allocation10 + $0x1b8] sm:$0xff]
        %v579 = vld [vmem:[#allocation10 + $0x1c0] sm:$0xff]
        %v580 = vld [vmem:[#allocation10 + $0x1c8] sm:$0xff]
        %v581 = vld [vmem:[#allocation10 + $0x1d0] sm:$0xff]
        %v582 = vld [vmem:[#allocation10 + $0x1d8] sm:$0xff]
        %v583 = vld [vmem:[#allocation10 + $0x1e0] sm:$0xff]
        %v584 = vld [vmem:[#allocation10 + $0x1e8] sm:$0xff]
        %v585 = vld [vmem:[#allocation10 + $0x1f0] sm:$0xff]
        %v586 = vld [vmem:[#allocation10 + $0x1f8] sm:$0xff]
        %v587 = vld [vmem:[#allocation10 + $0x200] sm:$0xff]
        %v588 = vld [vmem:[#allocation10 + $0x208] sm:$0xff]
        %v589 = vld [vmem:[#allocation10 + $0x210] sm:$0xff]
        %v590 = vld [vmem:[#allocation10 + $0x218] sm:$0xff]
        %v591 = vld [vmem:[#allocation10 + $0x220] sm:$0xff]
        %v592 = vld [vmem:[#allocation10 + $0x228] sm:$0xff]
        %v593 = vld [vmem:[#allocation10 + $0x230] sm:$0xff]
        %v594 = vld [vmem:[#allocation10 + $0x238] sm:$0xff]
        %v595 = vld [vmem:[#allocation10 + $0x240] sm:$0xff]
        %v596 = vld [vmem:[#allocation10 + $0x248] sm:$0xff]
        %v597 = vld [vmem:[#allocation10 + $0x250] sm:$0xff]
        %v598 = vld [vmem:[#allocation10 + $0x258] sm:$0xff]
        %v599 = vld [vmem:[#allocation10 + $0x260] sm:$0xff]
        %v600 = vld [vmem:[#allocation10 + $0x268] sm:$0xff]
        %v601 = vld [vmem:[#allocation10 + $0x270] sm:$0xff]
        %v602 = vld [vmem:[#allocation10 + $0x278] sm:$0xff]
        %v603 = vld [vmem:[#allocation10 + $0x280] sm:$0xff]
        %v604 = vld [vmem:[#allocation10 + $0x288] sm:$0xff]
        %v605 = vld [vmem:[#allocation10 + $0x290] sm:$0xff]
        %v606 = vld [vmem:[#allocation10 + $0x298] sm:$0xff]
        %v607 = vld [vmem:[#allocation10 + $0x2a0] sm:$0xff]
        %v608 = vld [vmem:[#allocation10 + $0x2a8] sm:$0xff]
        %v609 = vld [vmem:[#allocation10 + $0x2b0] sm:$0xff]
        %v610 = vld [vmem:[#allocation10 + $0x2b8] sm:$0xff]
        %v611 = vld [vmem:[#allocation10 + $0x2c0] sm:$0xff]
        %v612 = vld [vmem:[#allocation10 + $0x2c8] sm:$0xff]
        %v613 = vld [vmem:[#allocation10 + $0x2d0] sm:$0xff]
        %v614 = vld [vmem:[#allocation10 + $0x2d8] sm:$0xff]
        %v615 = vld [vmem:[#allocation10 + $0x2e0] sm:$0xff]
        %v616 = vld [vmem:[#allocation10 + $0x2e8] sm:$0xff]
        %v617 = vld [vmem:[#allocation10 + $0x2f0] sm:$0xff]
        %v618 = vld [vmem:[#allocation10 + $0x2f8] sm:$0xff]
        %v619 = vld [vmem:[#allocation10 + $0x300] sm:$0xff]
        %v620 = vld [vmem:[#allocation10 + $0x308] sm:$0xff]
        %v621 = vld [vmem:[#allocation10 + $0x310] sm:$0xff]
        %v622 = vld [vmem:[#allocation10 + $0x318] sm:$0xff]
        %v623 = vld [vmem:[#allocation10 + $0x320] sm:$0xff]
        %v624 = vld [vmem:[#allocation10 + $0x328] sm:$0xff]
        %v625 = vld [vmem:[#allocation10 + $0x330] sm:$0xff]
        %v626 = vld [vmem:[#allocation10 + $0x338] sm:$0xff]
        %v627 = vld [vmem:[#allocation10 + $0x340] sm:$0xff]
        %v628 = vld [vmem:[#allocation10 + $0x348] sm:$0xff]
        %v629 = vld [vmem:[#allocation10 + $0x350] sm:$0xff]
        %v630 = vld [vmem:[#allocation10 + $0x358] sm:$0xff]
        %v631 = vld [vmem:[#allocation10 + $0x360] sm:$0xff]
        %v632 = vld [vmem:[#allocation10 + $0x368] sm:$0xff]
        %v633 = vld [vmem:[#allocation10 + $0x370] sm:$0xff]
        %v634 = vld [vmem:[#allocation10 + $0x378] sm:$0xff]
        %v635 = vld [vmem:[#allocation10 + $0x380] sm:$0xff]
        %v636 = vld [vmem:[#allocation10 + $0x388] sm:$0xff]
        %v637 = vld [vmem:[#allocation10 + $0x390] sm:$0xff]
        %v638 = vld [vmem:[#allocation10 + $0x398] sm:$0xff]
        %v639 = vld [vmem:[#allocation10 + $0x3a0] sm:$0xff]
        %v640 = vld [vmem:[#allocation10 + $0x3a8] sm:$0xff]
        %v641 = vld [vmem:[#allocation10 + $0x3b0] sm:$0xff]
        %v642 = vld [vmem:[#allocation10 + $0x3b8] sm:$0xff]
        %v643 = vld [vmem:[#allocation10 + $0x3c0] sm:$0xff]
        %v644 = vld [vmem:[#allocation10 + $0x3c8] sm:$0xff]
        %v645 = vld [vmem:[#allocation10 + $0x3d0] sm:$0xff]
        %v646 = vld [vmem:[#allocation10 + $0x3d8] sm:$0xff]
        %v647 = vld [vmem:[#allocation10 + $0x3e0] sm:$0xff]
        %v648 = vld [vmem:[#allocation10 + $0x3e8] sm:$0xff]
        %v649 = vld [vmem:[#allocation10 + $0x3f0] sm:$0xff]
        %v650 = vld [vmem:[#allocation10 + $0x3f8] sm:$0xff]
        %v651 = vld [vmem:[#allocation10 + $0x400] sm:$0xff]
        %v652 = vld [vmem:[#allocation10 + $0x408] sm:$0xff]
        %v653 = vld [vmem:[#allocation10 + $0x410] sm:$0xff]
        %v654 = vld [vmem:[#allocation10 + $0x418] sm:$0xff]
        %v655 = vld [vmem:[#allocation10 + $0x420] sm:$0xff]
        %v656 = vld [vmem:[#allocation10 + $0x428] sm:$0xff]
        %v657 = vld [vmem:[#allocation10 + $0x430] sm:$0xff]
        %v658 = vld [vmem:[#allocation10 + $0x438] sm:$0xff]
        %v659 = vld [vmem:[#allocation10 + $0x440] sm:$0xff]
        %v660 = vld [vmem:[#allocation10 + $0x448] sm:$0xff]
        %v661 = vld [vmem:[#allocation10 + $0x450] sm:$0xff]
        %v662 = vld [vmem:[#allocation10 + $0x458] sm:$0xff]
        %v663 = vld [vmem:[#allocation10 + $0x460] sm:$0xff]
        %v664 = vld [vmem:[#allocation10 + $0x468] sm:$0xff]
        %v665 = vld [vmem:[#allocation10 + $0x470] sm:$0xff]
        %v666 = vld [vmem:[#allocation10 + $0x478] sm:$0xff]
        %v667 = vld [vmem:[#allocation10 + $0x480] sm:$0xff]
        %v668 = vld [vmem:[#allocation10 + $0x488] sm:$0xff]
        %v669 = vld [vmem:[#allocation10 + $0x490] sm:$0xff]
        %v670 = vld [vmem:[#allocation10 + $0x498] sm:$0xff]
        %v671 = vld [vmem:[#allocation10 + $0x4a0] sm:$0xff]
        %v672 = vld [vmem:[#allocation10 + $0x4a8] sm:$0xff]
        %v673 = vld [vmem:[#allocation10 + $0x4b0] sm:$0xff]
        %v674 = vld [vmem:[#allocation10 + $0x4b8] sm:$0xff]
        %v675 = vld [vmem:[#allocation10 + $0x4c0] sm:$0xff]
        %v676 = vld [vmem:[#allocation10 + $0x4c8] sm:$0xff]
        %v677 = vld [vmem:[#allocation10 + $0x4d0] sm:$0xff]
        %v678 = vld [vmem:[#allocation10 + $0x4d8] sm:$0xff]
        %v679 = vld [vmem:[#allocation10 + $0x4e0] sm:$0xff]
        %v680 = vld [vmem:[#allocation10 + $0x4e8] sm:$0xff]
        %v681 = vld [vmem:[#allocation10 + $0x4f0] sm:$0xff]
        %v682 = vld [vmem:[#allocation10 + $0x4f8] sm:$0xff]
        %v683 = vld [vmem:[#allocation10 + $0x500] sm:$0xff]
        %v684 = vld [vmem:[#allocation10 + $0x508] sm:$0xff]
        %v685 = vld [vmem:[#allocation10 + $0x510] sm:$0xff]
        %v686 = vld [vmem:[#allocation10 + $0x518] sm:$0xff]
        %v687 = vld [vmem:[#allocation10 + $0x520] sm:$0xff]
        %v688 = vld [vmem:[#allocation10 + $0x528] sm:$0xff]
        %v689 = vld [vmem:[#allocation10 + $0x530] sm:$0xff]
        %v690 = vld [vmem:[#allocation10 + $0x538] sm:$0xff]
        %v691 = vld [vmem:[#allocation10 + $0x540] sm:$0xff]
        %v692 = vld [vmem:[#allocation10 + $0x548] sm:$0xff]
        %v693 = vld [vmem:[#allocation10 + $0x550] sm:$0xff]
        %v694 = vld [vmem:[#allocation10 + $0x558] sm:$0xff]
        %v695 = vld [vmem:[#allocation10 + $0x560] sm:$0xff]
        %v696 = vld [vmem:[#allocation10 + $0x568] sm:$0xff]
        %v697 = vld [vmem:[#allocation10 + $0x570] sm:$0xff]
        %v698 = vld [vmem:[#allocation10 + $0x578] sm:$0xff]
        %v699 = vld [vmem:[#allocation10 + $0x580] sm:$0xff]
        %v700 = vld [vmem:[#allocation10 + $0x588] sm:$0xff]
        %v701 = vld [vmem:[#allocation10 + $0x590] sm:$0xff]
        %v702 = vld [vmem:[#allocation10 + $0x598] sm:$0xff]
        %v703 = vld [vmem:[#allocation10 + $0x5a0] sm:$0xff]
        %v704 = vld [vmem:[#allocation10 + $0x5a8] sm:$0xff]
        %v705 = vld [vmem:[#allocation10 + $0x5b0] sm:$0xff]
        %v706 = vld [vmem:[#allocation10 + $0x5b8] sm:$0xff]
        %v707 = vld [vmem:[#allocation10 + $0x5c0] sm:$0xff]
        %v708 = vld [vmem:[#allocation10 + $0x5c8] sm:$0xff]
        %v709 = vld [vmem:[#allocation10 + $0x5d0] sm:$0xff]
        %v710 = vld [vmem:[#allocation10 + $0x5d8] sm:$0xff]
        %v711 = vld [vmem:[#allocation10 + $0x5e0] sm:$0xff]
        %v712 = vld [vmem:[#allocation10 + $0x5e8] sm:$0xff]
        %v713 = vld [vmem:[#allocation10 + $0x5f0] sm:$0xff]
        %v714 = vld [vmem:[#allocation10 + $0x5f8] sm:$0xff]
        %715 = vmatprep.subr.mxu0 %v524
        %716 = vmatpush1.msra.mxu0 %v523
        %717 = vmatprep.subr.mxu0 %v530
        %718 = vmatpush1.msra.mxu0 %v529
        %719 = vmatprep.subr.mxu0 %v536
        %720 = vmatpush1.msra.mxu0 %v535
        %721 = vmatprep.subr.mxu0 %v542
        %722 = vmatpush1.msra.mxu0 %v541
        %723 = vmatprep.subr.mxu0 %v548
        %724 = vmatpush1.msra.mxu0 %v547
        %725 = vmatprep.subr.mxu0 %v554
        %726 = vmatpush1.msra.mxu0 %v553
        %727 = vmatprep.subr.mxu0 %v560
        %728 = vmatpush1.msra.mxu0 %v559
        %729 = vmatprep.subr.mxu0 %v566
        %730 = vmatpush1.msra.mxu0 %v565
        %731 = vmatprep.subr.mxu0 %v572
        %732 = vmatpush1.msra.mxu0 %v571
        %733 = vmatprep.subr.mxu0 %v578
        %734 = vmatpush1.msra.mxu0 %v577
        %735 = vmatprep.subr.mxu0 %v584
        %736 = vmatpush1.msra.mxu0 %v583
        %737 = vmatprep.subr.mxu0 %v590
        %738 = vmatpush1.msra.mxu0 %v589
        %739 = vmatprep.subr.mxu0 %v596
        %740 = vmatpush1.msra.mxu0 %v595
        %741 = vmatprep.subr.mxu0 %v602
        %742 = vmatpush1.msra.mxu0 %v601
        %743 = vmatprep.subr.mxu0 %v608
        %744 = vmatpush1.msra.mxu0 %v607
        %745 = vmatprep.subr.mxu0 %v614
        %746 = vmatpush1.msra.mxu0 %v613
        %747 = vmatprep.subr.mxu0 %v620
        %748 = vmatpush1.msra.mxu0 %v619
        %749 = vmatprep.subr.mxu0 %v626
        %750 = vmatpush1.msra.mxu0 %v625
        %751 = vmatprep.subr.mxu0 %v632
        %752 = vmatpush1.msra.mxu0 %v631
        %753 = vmatprep.subr.mxu0 %v638
        %754 = vmatpush1.msra.mxu0 %v637
        %755 = vmatprep.subr.mxu0 %v644
        %756 = vmatpush1.msra.mxu0 %v643
        %757 = vmatprep.subr.mxu0 %v650
        %758 = vmatpush1.msra.mxu0 %v649
        %759 = vmatprep.subr.mxu0 %v656
        %760 = vmatpush1.msra.mxu0 %v655
        %761 = vmatprep.subr.mxu0 %v662
        %762 = vmatpush1.msra.mxu0 %v661
        %763 = vmatprep.subr.mxu0 %v668
        %764 = vmatpush1.msra.mxu0 %v667
        %765 = vmatprep.subr.mxu0 %v674
        %766 = vmatpush1.msra.mxu0 %v673
        %767 = vmatprep.subr.mxu0 %v680
        %768 = vmatpush1.msra.mxu0 %v679
        %769 = vmatprep.subr.mxu0 %v686
        %770 = vmatpush1.msra.mxu0 %v685
        %771 = vmatprep.subr.mxu0 %v692
        %772 = vmatpush1.msra.mxu0 %v691
        %773 = vmatprep.subr.mxu0 %v698
        %774 = vmatpush1.msra.mxu0 %v697
        %775 = vmatprep.subr.mxu0 %v704
        %776 = vmatpush1.msra.mxu0 %v703
        %777 = vmatprep.subr.mxu0 %v710
        %778 = vmatpush1.msra.mxu0 %v709
        %779 = vmatprep.mubr.f32.mxu0 %v522
        %780 = vmatmul.mubr.f32.gmra.mrb[0].mxu0 %v521
        %v781 = vpop.f32.mrb[0].mxu0
        %v782 = vadd.f32 0.0, %v781
        %v783 = vpop.f32.mrb[0].mxu0
        %v784 = vadd.f32 0.0, %v783
        %785 = vdwg.mxu0
        %786 = vmatprep.subr.mxu0 %v526
        %787 = vmatpush1.msra.mxu0 %v525
        %788 = vmatprep.subr.mxu0 %v532
        %789 = vmatpush1.msra.mxu0 %v531
        %790 = vmatprep.subr.mxu0 %v538
        %791 = vmatpush1.msra.mxu0 %v537
        %792 = vmatprep.subr.mxu0 %v544
        %793 = vmatpush1.msra.mxu0 %v543
        %794 = vmatprep.subr.mxu0 %v550
        %795 = vmatpush1.msra.mxu0 %v549
        %796 = vmatprep.subr.mxu0 %v556
        %797 = vmatpush1.msra.mxu0 %v555
        %798 = vmatprep.subr.mxu0 %v562
        %799 = vmatpush1.msra.mxu0 %v561
        %800 = vmatprep.subr.mxu0 %v568
        %801 = vmatpush1.msra.mxu0 %v567
        %802 = vmatprep.subr.mxu0 %v574
        %803 = vmatpush1.msra.mxu0 %v573
        %804 = vmatprep.subr.mxu0 %v580
        %805 = vmatpush1.msra.mxu0 %v579
        %806 = vmatprep.subr.mxu0 %v586
        %807 = vmatpush1.msra.mxu0 %v585
        %808 = vmatprep.subr.mxu0 %v592
        %809 = vmatpush1.msra.mxu0 %v591
        %810 = vmatprep.subr.mxu0 %v598
        %811 = vmatpush1.msra.mxu0 %v597
        %812 = vmatprep.subr.mxu0 %v604
        %813 = vmatpush1.msra.mxu0 %v603
        %814 = vmatprep.subr.mxu0 %v610
        %815 = vmatpush1.msra.mxu0 %v609
        %816 = vmatprep.subr.mxu0 %v616
        %817 = vmatpush1.msra.mxu0 %v615
        %818 = vmatprep.subr.mxu0 %v622
        %819 = vmatpush1.msra.mxu0 %v621
        %820 = vmatprep.subr.mxu0 %v628
        %821 = vmatpush1.msra.mxu0 %v627
        %822 = vmatprep.subr.mxu0 %v634
        %823 = vmatpush1.msra.mxu0 %v633
        %824 = vmatprep.subr.mxu0 %v640
        %825 = vmatpush1.msra.mxu0 %v639
        %826 = vmatprep.subr.mxu0 %v646
        %827 = vmatpush1.msra.mxu0 %v645
        %828 = vmatprep.subr.mxu0 %v652
        %829 = vmatpush1.msra.mxu0 %v651
        %830 = vmatprep.subr.mxu0 %v658
        %831 = vmatpush1.msra.mxu0 %v657
        %832 = vmatprep.subr.mxu0 %v664
        %833 = vmatpush1.msra.mxu0 %v663
        %834 = vmatprep.subr.mxu0 %v670
        %835 = vmatpush1.msra.mxu0 %v669
        %836 = vmatprep.subr.mxu0 %v676
        %837 = vmatpush1.msra.mxu0 %v675
        %838 = vmatprep.subr.mxu0 %v682
        %839 = vmatpush1.msra.mxu0 %v681
        %840 = vmatprep.subr.mxu0 %v688
        %841 = vmatpush1.msra.mxu0 %v687
        %842 = vmatprep.subr.mxu0 %v694
        %843 = vmatpush1.msra.mxu0 %v693
        %844 = vmatprep.subr.mxu0 %v700
        %845 = vmatpush1.msra.mxu0 %v699
        %846 = vmatprep.subr.mxu0 %v706
        %847 = vmatpush1.msra.mxu0 %v705
        %848 = vmatprep.subr.mxu0 %v712
        %849 = vmatpush1.msra.mxu0 %v711
        %850 = vmatprep.mubr.f32.mxu0 %v522
        %851 = vmatmul.mubr.f32.gmra.mrb[0].mxu0 %v521
        %v852 = vpop.f32.mrb[0].mxu0
        %v853 = vadd.f32 0.0, %v852
        %v854 = vpop.f32.mrb[0].mxu0
        %v855 = vadd.f32 0.0, %v854
        %856 = vdwg.mxu0
        %857 = vmatprep.subr.mxu0 %v528
        %858 = vmatpush1.msra.mxu0 %v527
        %859 = vmatprep.subr.mxu0 %v534
        %860 = vmatpush1.msra.mxu0 %v533
        %861 = vmatprep.subr.mxu0 %v540
        %862 = vmatpush1.msra.mxu0 %v539
        %863 = vmatprep.subr.mxu0 %v546
        %864 = vmatpush1.msra.mxu0 %v545
        %865 = vmatprep.subr.mxu0 %v552
        %866 = vmatpush1.msra.mxu0 %v551
        %867 = vmatprep.subr.mxu0 %v558
        %868 = vmatpush1.msra.mxu0 %v557
        %869 = vmatprep.subr.mxu0 %v564
        %870 = vmatpush1.msra.mxu0 %v563
        %871 = vmatprep.subr.mxu0 %v570
        %872 = vmatpush1.msra.mxu0 %v569
        %873 = vmatprep.subr.mxu0 %v576
        %874 = vmatpush1.msra.mxu0 %v575
        %875 = vmatprep.subr.mxu0 %v582
        %876 = vmatpush1.msra.mxu0 %v581
        %877 = vmatprep.subr.mxu0 %v588
        %878 = vmatpush1.msra.mxu0 %v587
        %879 = vmatprep.subr.mxu0 %v594
        %880 = vmatpush1.msra.mxu0 %v593
        %881 = vmatprep.subr.mxu0 %v600
        %882 = vmatpush1.msra.mxu0 %v599
        %883 = vmatprep.subr.mxu0 %v606
        %884 = vmatpush1.msra.mxu0 %v605
        %885 = vmatprep.subr.mxu0 %v612
        %886 = vmatpush1.msra.mxu0 %v611
        %887 = vmatprep.subr.mxu0 %v618
        %888 = vmatpush1.msra.mxu0 %v617
        %889 = vmatprep.subr.mxu0 %v624
        %890 = vmatpush1.msra.mxu0 %v623
        %891 = vmatprep.subr.mxu0 %v630
        %892 = vmatpush1.msra.mxu0 %v629
        %893 = vmatprep.subr.mxu0 %v636
        %894 = vmatpush1.msra.mxu0 %v635
        %895 = vmatprep.subr.mxu0 %v642
        %896 = vmatpush1.msra.mxu0 %v641
        %897 = vmatprep.subr.mxu0 %v648
        %898 = vmatpush1.msra.mxu0 %v647
        %899 = vmatprep.subr.mxu0 %v654
        %900 = vmatpush1.msra.mxu0 %v653
        %901 = vmatprep.subr.mxu0 %v660
        %902 = vmatpush1.msra.mxu0 %v659
        %903 = vmatprep.subr.mxu0 %v666
        %904 = vmatpush1.msra.mxu0 %v665
        %905 = vmatprep.subr.mxu0 %v672
        %906 = vmatpush1.msra.mxu0 %v671
        %907 = vmatprep.subr.mxu0 %v678
        %908 = vmatpush1.msra.mxu0 %v677
        %909 = vmatprep.subr.mxu0 %v684
        %910 = vmatpush1.msra.mxu0 %v683
        %911 = vmatprep.subr.mxu0 %v690
        %912 = vmatpush1.msra.mxu0 %v689
        %913 = vmatprep.subr.mxu0 %v696
        %914 = vmatpush1.msra.mxu0 %v695
        %915 = vmatprep.subr.mxu0 %v702
        %916 = vmatpush1.msra.mxu0 %v701
        %917 = vmatprep.subr.mxu0 %v708
        %918 = vmatpush1.msra.mxu0 %v707
        %919 = vmatprep.subr.mxu0 %v714
        %920 = vmatpush1.msra.mxu0 %v713
        %921 = vmatprep.mubr.f32.mxu0 %v522
        %922 = vmatmul.mubr.f32.gmra.mrb[0].mxu0 %v521
        %v923 = vpop.f32.mrb[0].mxu0
        %v924 = vadd.f32 0.0, %v923
        %v925 = vpop.f32.mrb[0].mxu0
        %v926 = vadd.f32 0.0, %v925
        %927 = vdwg.mxu0
        %v928 = vld [vmem:[%s5] sm:$0x3]
        %v930 = vlaneseq
        %v931 = vshrl.u32 %v930, 7
        %v932 = vsub.s32 0, %v931
        %v933 = vrot.slane %v928, %v932
        %v934 = vlaneseq
        %v935 = vshrl.u32 %v934, 7
        %v936 = vsub.s32 1, %v935
        %v937 = vrot.slane %v928, %v936
        %v940 = vadd.f32 %v782, %v933
        %v941 = vadd.f32 %v784, %v937
        %vm942 = vcmask 1040384
        %v943 = vsel %vm942, %v940, -inf
        %v944 = vsel %vm942, %v941, -inf
        %v945 = vmax.f32 %v943, %v944
        %946 = vmax.xlane.f32.xlu0 %v945
        %v947 = vpop.xlane.xlu0 %946
        %v948 = vsub.f32 %v940, %v947
        %v949 = vsub.f32 %v941, %v947
        %v950 = vmul.f32 %v948, 1.442695
        %v951 = vpow.pop %v950
        %v952 = vmul.f32 %v949, 1.442695
        %v953 = vpow.pop %v952
        %v954 = vsel %vm942, %v951, 0.0
        %v955 = vsel %vm942, %v953, 0.0
        %v956 = vadd.f32 %v954, %v955
        %957 = vadd.xlane.f32.xlu0 %v956
        %v958 = vpop.xlane.xlu0 %957
        %v959 = vrcp.pop %v958
        %v960 = vmul.f32 %v951, %v959
        %v961 = vmul.f32 %v953, %v959
        %v964 = vcombine.low %v960, %v961
        %v966 = vunpack.c.l.s4 1966171168
        %v967 = vunpack.c.0.s8 %v966
        %v968 = vlaneseq
        %v969 = vshrl.u32 %v968, 7
        %v970 = vsub.s32 %v967, %v969
        %v971 = vrot.slane %v964, %v970
        %v973 = vunpack.c.l.s4 1966171168
        %v974 = vunpack.c.0.s8 %v973
        %v975 = vlaneseq
        %v976 = vshrl.u32 %v975, 7
        %v977 = vsub.s32 %v974, %v976
        %v978 = vrot.slane %v971, %v977
        %v980 = vlaneseq
        %vm981 = vcmp.ge.s32.totalorder %v980, 0
        %vm982 = vcmp.lt.s32.totalorder %v980, 256
        %vm983 = vmand %vm981, %vm982
        %984 = vst.msk [vmem:[%s506] sm:$0x3] %vm983, %v978
        %v985 = vld [vmem:[#allocation8] sm:$0xff]
        %v986 = vld [vmem:[#allocation8 + $0x8] sm:$0xff]
        %v987 = vld [vmem:[#allocation8 + $0x10] sm:$0xff]
        %v988 = vld [vmem:[#allocation8 + $0x18] sm:$0xff]
        %v989 = vld [vmem:[#allocation8 + $0x20] sm:$0xff]
        %v990 = vld [vmem:[#allocation8 + $0x28] sm:$0xff]
        %v991 = vld [vmem:[#allocation8 + $0x30] sm:$0xff]
        %v992 = vld [vmem:[#allocation8 + $0x38] sm:$0xff]
        %v993 = vld [vmem:[#allocation8 + $0x40] sm:$0xff]
        %v994 = vld [vmem:[#allocation8 + $0x48] sm:$0xff]
        %v995 = vld [vmem:[#allocation8 + $0x50] sm:$0xff]
        %v996 = vld [vmem:[#allocation8 + $0x58] sm:$0xff]
        %v997 = vld [vmem:[#allocation8 + $0x60] sm:$0xff]
        %v998 = vld [vmem:[#allocation8 + $0x68] sm:$0xff]
        %v999 = vld [vmem:[#allocation8 + $0x70] sm:$0xff]
        %v1000 = vld [vmem:[#allocation8 + $0x78] sm:$0xff]
        %v1001 = vld [vmem:[#allocation8 + $0x80] sm:$0xff]
        %v1002 = vld [vmem:[#allocation8 + $0x88] sm:$0xff]
        %v1003 = vld [vmem:[#allocation8 + $0x90] sm:$0xff]
        %v1004 = vld [vmem:[#allocation8 + $0x98] sm:$0xff]
        %v1005 = vld [vmem:[#allocation8 + $0xa0] sm:$0xff]
        %v1006 = vld [vmem:[#allocation8 + $0xa8] sm:$0xff]
        %v1007 = vld [vmem:[#allocation8 + $0xb0] sm:$0xff]
        %v1008 = vld [vmem:[#allocation8 + $0xb8] sm:$0xff]
        %v1009 = vld [vmem:[#allocation8 + $0xc0] sm:$0xff]
        %v1010 = vld [vmem:[#allocation8 + $0xc8] sm:$0xff]
        %v1011 = vld [vmem:[#allocation8 + $0xd0] sm:$0xff]
        %v1012 = vld [vmem:[#allocation8 + $0xd8] sm:$0xff]
        %v1013 = vld [vmem:[#allocation8 + $0xe0] sm:$0xff]
        %v1014 = vld [vmem:[#allocation8 + $0xe8] sm:$0xff]
        %v1015 = vld [vmem:[#allocation8 + $0xf0] sm:$0xff]
        %v1016 = vld [vmem:[#allocation8 + $0xf8] sm:$0xff]
        %1017 = vmatprep.subr.mxu0 0.0
        %1018 = vmatpush1.msra.mxu0 %v985
        %1019 = vmatprep.subr.mxu0 0.0
        %1020 = vmatpush1.msra.mxu0 %v986
        %1021 = vmatprep.subr.mxu0 0.0
        %1022 = vmatpush1.msra.mxu0 %v987
        %1023 = vmatprep.subr.mxu0 0.0
        %1024 = vmatpush1.msra.mxu0 %v988
        %1025 = vmatprep.subr.mxu0 0.0
        %1026 = vmatpush1.msra.mxu0 %v989
        %1027 = vmatprep.subr.mxu0 0.0
        %1028 = vmatpush1.msra.mxu0 %v990
        %1029 = vmatprep.subr.mxu0 0.0
        %1030 = vmatpush1.msra.mxu0 %v991
        %1031 = vmatprep.subr.mxu0 0.0
        %1032 = vmatpush1.msra.mxu0 %v992
        %1033 = vmatprep.subr.mxu0 0.0
        %1034 = vmatpush1.msra.mxu0 %v993
        %1035 = vmatprep.subr.mxu0 0.0
        %1036 = vmatpush1.msra.mxu0 %v994
        %1037 = vmatprep.subr.mxu0 0.0
        %1038 = vmatpush1.msra.mxu0 %v995
        %1039 = vmatprep.subr.mxu0 0.0
        %1040 = vmatpush1.msra.mxu0 %v996
        %1041 = vmatprep.subr.mxu0 0.0
        %1042 = vmatpush1.msra.mxu0 %v997
        %1043 = vmatprep.subr.mxu0 0.0
        %1044 = vmatpush1.msra.mxu0 %v998
        %1045 = vmatprep.subr.mxu0 0.0
        %1046 = vmatpush1.msra.mxu0 %v999
        %1047 = vmatprep.subr.mxu0 0.0
        %1048 = vmatpush1.msra.mxu0 %v1000
        %1049 = vmatprep.subr.mxu0 0.0
        %1050 = vmatpush1.msra.mxu0 %v1001
        %1051 = vmatprep.subr.mxu0 0.0
        %1052 = vmatpush1.msra.mxu0 %v1002
        %1053 = vmatprep.subr.mxu0 0.0
        %1054 = vmatpush1.msra.mxu0 %v1003
        %1055 = vmatprep.subr.mxu0 0.0
        %1056 = vmatpush1.msra.mxu0 %v1004
        %1057 = vmatprep.subr.mxu0 0.0
        %1058 = vmatpush1.msra.mxu0 %v1005
        %1059 = vmatprep.subr.mxu0 0.0
        %1060 = vmatpush1.msra.mxu0 %v1006
        %1061 = vmatprep.subr.mxu0 0.0
        %1062 = vmatpush1.msra.mxu0 %v1007
        %1063 = vmatprep.subr.mxu0 0.0
        %1064 = vmatpush1.msra.mxu0 %v1008
        %1065 = vmatprep.subr.mxu0 0.0
        %1066 = vmatpush1.msra.mxu0 %v1009
        %1067 = vmatprep.subr.mxu0 0.0
        %1068 = vmatpush1.msra.mxu0 %v1010
        %1069 = vmatprep.subr.mxu0 0.0
        %1070 = vmatpush1.msra.mxu0 %v1011
        %1071 = vmatprep.subr.mxu0 0.0
        %1072 = vmatpush1.msra.mxu0 %v1012
        %1073 = vmatprep.subr.mxu0 0.0
        %1074 = vmatpush1.msra.mxu0 %v1013
        %1075 = vmatprep.subr.mxu0 0.0
        %1076 = vmatpush1.msra.mxu0 %v1014
        %1077 = vmatprep.subr.mxu0 0.0
        %1078 = vmatpush1.msra.mxu0 %v1015
        %1079 = vmatprep.subr.mxu0 0.0
        %1080 = vmatpush1.msra.mxu0 %v1016
        %1081 = vmatprep.mubr.f32.mxu0 %v953
        %1082 = vmatmul.mubr.f32.gmra.mrb[0].mxu0 %v951
        %v1083 = vpop.f32.mrb[0].mxu0
        %v1084 = vadd.f32 0.0, %v1083
        %v1085 = vpop.f32.mrb[0].mxu0
        %1086 = vdwg.mxu0
        %v1087 = vmul.f32 %v1084, %v959
        %v1088 = vadd.f32 %v853, %v1087
        %v1089 = vld [vmem:[%s6] sm:$0x1]
        %v1090 = vadd.f32 %v1088, %v1089
        %v1091 = vmax.f32 %v1090, 0.0
        %v1092 = vld [vmem:[#allocation11] sm:$0xff]
        %v1093 = vld [vmem:[#allocation11 + $0x8] sm:$0xff]
        %v1094 = vld [vmem:[#allocation11 + $0x10] sm:$0xff]
        %v1095 = vld [vmem:[#allocation11 + $0x18] sm:$0xff]
        %v1096 = vld [vmem:[#allocation11 + $0x20] sm:$0xff]
        %v1097 = vld [vmem:[#allocation11 + $0x28] sm:$0xff]
        %v1098 = vld [vmem:[#allocation11 + $0x30] sm:$0xff]
        %v1099 = vld [vmem:[#allocation11 + $0x38] sm:$0xff]
        %v1100 = vld [vmem:[#allocation11 + $0x40] sm:$0xff]
        %v1101 = vld [vmem:[#allocation11 + $0x48] sm:$0xff]
        %v1102 = vld [vmem:[#allocation11 + $0x50] sm:$0xff]
        %v1103 = vld [vmem:[#allocation11 + $0x58] sm:$0xff]
        %v1104 = vld [vmem:[#allocation11 + $0x60] sm:$0xff]
        %v1105 = vld [vmem:[#allocation11 + $0x68] sm:$0xff]
        %v1106 = vld [vmem:[#allocation11 + $0x70] sm:$0xff]
        %v1107 = vld [vmem:[#allocation11 + $0x78] sm:$0xff]
        %v1108 = vld [vmem:[#allocation11 + $0x80] sm:$0xff]
        %v1109 = vld [vmem:[#allocation11 + $0x88] sm:$0xff]
        %v1110 = vld [vmem:[#allocation11 + $0x90] sm:$0xff]
        %v1111 = vld [vmem:[#allocation11 + $0x98] sm:$0xff]
        %v1112 = vld [vmem:[#allocation11 + $0xa0] sm:$0xff]
        %v1113 = vld [vmem:[#allocation11 + $0xa8] sm:$0xff]
        %v1114 = vld [vmem:[#allocation11 + $0xb0] sm:$0xff]
        %v1115 = vld [vmem:[#allocation11 + $0xb8] sm:$0xff]
        %v1116 = vld [vmem:[#allocation11 + $0xc0] sm:$0xff]
        %v1117 = vld [vmem:[#allocation11 + $0xc8] sm:$0xff]
        %v1118 = vld [vmem:[#allocation11 + $0xd0] sm:$0xff]
        %v1119 = vld [vmem:[#allocation11 + $0xd8] sm:$0xff]
        %v1120 = vld [vmem:[#allocation11 + $0xe0] sm:$0xff]
        %v1121 = vld [vmem:[#allocation11 + $0xe8] sm:$0xff]
        %v1122 = vld [vmem:[#allocation11 + $0xf0] sm:$0xff]
        %v1123 = vld [vmem:[#allocation11 + $0xf8] sm:$0xff]
        %v1124 = vld [vmem:[#allocation11 + $0x100] sm:$0xff]
        %v1125 = vld [vmem:[#allocation11 + $0x108] sm:$0xff]
        %v1126 = vld [vmem:[#allocation11 + $0x110] sm:$0xff]
        %v1127 = vld [vmem:[#allocation11 + $0x118] sm:$0xff]
        %v1128 = vld [vmem:[#allocation11 + $0x120] sm:$0xff]
        %v1129 = vld [vmem:[#allocation11 + $0x128] sm:$0xff]
        %v1130 = vld [vmem:[#allocation11 + $0x130] sm:$0xff]
        %v1131 = vld [vmem:[#allocation11 + $0x138] sm:$0xff]
        %v1132 = vld [vmem:[#allocation11 + $0x140] sm:$0xff]
        %v1133 = vld [vmem:[#allocation11 + $0x148] sm:$0xff]
        %v1134 = vld [vmem:[#allocation11 + $0x150] sm:$0xff]
        %v1135 = vld [vmem:[#allocation11 + $0x158] sm:$0xff]
        %v1136 = vld [vmem:[#allocation11 + $0x160] sm:$0xff]
        %v1137 = vld [vmem:[#allocation11 + $0x168] sm:$0xff]
        %v1138 = vld [vmem:[#allocation11 + $0x170] sm:$0xff]
        %v1139 = vld [vmem:[#allocation11 + $0x178] sm:$0xff]
        %v1140 = vld [vmem:[%s8] sm:$0x7]
        %v1142 = vlaneseq
        %v1143 = vshrl.u32 %v1142, 7
        %v1144 = vsub.s32 0, %v1143
        %v1145 = vrot.slane %v1140, %v1144
        %v1146 = vlaneseq
        %v1147 = vshrl.u32 %v1146, 7
        %v1148 = vsub.s32 1, %v1147
        %v1149 = vrot.slane %v1140, %v1148
        %v1150 = vlaneseq
        %v1151 = vshrl.u32 %v1150, 7
        %v1152 = vsub.s32 2, %v1151
        %v1153 = vrot.slane %v1140, %v1152
        %1157 = vmatprep.subr.mxu0 %v1093
        %1158 = vmatpush1.msra.mxu0 %v1092
        %1159 = vmatprep.subr.mxu0 %v1096
        %1160 = vmatpush1.msra.mxu0 %v1095
        %1161 = vmatprep.subr.mxu0 %v1099
        %1162 = vmatpush1.msra.mxu0 %v1098
        %1163 = vmatprep.subr.mxu0 %v1102
        %1164 = vmatpush1.msra.mxu0 %v1101
        %1165 = vmatprep.subr.mxu0 %v1105
        %1166 = vmatpush1.msra.mxu0 %v1104
        %1167 = vmatprep.subr.mxu0 %v1108
        %1168 = vmatpush1.msra.mxu0 %v1107
        %1169 = vmatprep.subr.mxu0 %v1111
        %1170 = vmatpush1.msra.mxu0 %v1110
        %1171 = vmatprep.subr.mxu0 %v1114
        %1172 = vmatpush1.msra.mxu0 %v1113
        %1173 = vmatprep.subr.mxu0 %v1117
        %1174 = vmatpush1.msra.mxu0 %v1116
        %1175 = vmatprep.subr.mxu0 %v1120
        %1176 = vmatpush1.msra.mxu0 %v1119
        %1177 = vmatprep.subr.mxu0 %v1123
        %1178 = vmatpush1.msra.mxu0 %v1122
        %1179 = vmatprep.subr.mxu0 %v1126
        %1180 = vmatpush1.msra.mxu0 %v1125
        %1181 = vmatprep.subr.mxu0 %v1129
        %1182 = vmatpush1.msra.mxu0 %v1128
        %1183 = vmatprep.subr.mxu0 %v1132
        %1184 = vmatpush1.msra.mxu0 %v1131
        %1185 = vmatprep.subr.mxu0 %v1135
        %1186 = vmatpush1.msra.mxu0 %v1134
        %1187 = vmatprep.subr.mxu0 %v1138
        %1188 = vmatpush1.msra.mxu0 %v1137
        %1189 = vmatprep.subr.mxu0 0.0
        %1190 = vmatpush1.msra.mxu0 0.0
        %1191 = vmatprep.subr.mxu0 0.0
        %1192 = vmatpush1.msra.mxu0 0.0
        %1193 = vmatprep.subr.mxu0 0.0
        %1194 = vmatpush1.msra.mxu0 0.0
        %1195 = vmatprep.subr.mxu0 0.0
        %1196 = vmatpush1.msra.mxu0 0.0
        %1197 = vmatprep.subr.mxu0 0.0
        %1198 = vmatpush1.msra.mxu0 0.0
        %1199 = vmatprep.subr.mxu0 0.0
        %1200 = vmatpush1.msra.mxu0 0.0
        %1201 = vmatprep.subr.mxu0 0.0
        %1202 = vmatpush1.msra.mxu0 0.0
        %1203 = vmatprep.subr.mxu0 0.0
        %1204 = vmatpush1.msra.mxu0 0.0
        %1205 = vmatprep.subr.mxu0 0.0
        %1206 = vmatpush1.msra.mxu0 0.0
        %1207 = vmatprep.subr.mxu0 0.0
        %1208 = vmatpush1.msra.mxu0 0.0
        %1209 = vmatprep.subr.mxu0 0.0
        %1210 = vmatpush1.msra.mxu0 0.0
        %1211 = vmatprep.subr.mxu0 0.0
        %1212 = vmatpush1.msra.mxu0 0.0
        %1213 = vmatprep.subr.mxu0 0.0
        %1214 = vmatpush1.msra.mxu0 0.0
        %1215 = vmatprep.subr.mxu0 0.0
        %1216 = vmatpush1.msra.mxu0 0.0
        %1217 = vmatprep.subr.mxu0 0.0
        %1218 = vmatpush1.msra.mxu0 0.0
        %1219 = vmatprep.subr.mxu0 0.0
        %1220 = vmatpush1.msra.mxu0 0.0
        %1221 = vmatprep.mubr.f32.mxu0 0.0
        %1222 = vmatmul.mubr.f32.gmra.mrb[0].mxu0 %v1091
        %v1223 = vpop.f32.mrb[0].mxu0
        %v1224 = vadd.f32 %v1145, %v1223
        %v1225 = vpop.f32.mrb[0].mxu0
        %v1226 = vadd.f32 %v1149, %v1225
        %1227 = vdwg.mxu0
        %1228 = vmatprep.subr.mxu0 0.0
        %1229 = vmatpush1.msra.mxu0 %v1094
        %1230 = vmatprep.subr.mxu0 0.0
        %1231 = vmatpush1.msra.mxu0 %v1097
        %1232 = vmatprep.subr.mxu0 0.0
        %1233 = vmatpush1.msra.mxu0 %v1100
        %1234 = vmatprep.subr.mxu0 0.0
        %1235 = vmatpush1.msra.mxu0 %v1103
        %1236 = vmatprep.subr.mxu0 0.0
        %1237 = vmatpush1.msra.mxu0 %v1106
        %1238 = vmatprep.subr.mxu0 0.0
        %1239 = vmatpush1.msra.mxu0 %v1109
        %1240 = vmatprep.subr.mxu0 0.0
        %1241 = vmatpush1.msra.mxu0 %v1112
        %1242 = vmatprep.subr.mxu0 0.0
        %1243 = vmatpush1.msra.mxu0 %v1115
        %1244 = vmatprep.subr.mxu0 0.0
        %1245 = vmatpush1.msra.mxu0 %v1118
        %1246 = vmatprep.subr.mxu0 0.0
        %1247 = vmatpush1.msra.mxu0 %v1121
        %1248 = vmatprep.subr.mxu0 0.0
        %1249 = vmatpush1.msra.mxu0 %v1124
        %1250 = vmatprep.subr.mxu0 0.0
        %1251 = vmatpush1.msra.mxu0 %v1127
        %1252 = vmatprep.subr.mxu0 0.0
        %1253 = vmatpush1.msra.mxu0 %v1130
        %1254 = vmatprep.subr.mxu0 0.0
        %1255 = vmatpush1.msra.mxu0 %v1133
        %1256 = vmatprep.subr.mxu0 0.0
        %1257 = vmatpush1.msra.mxu0 %v1136
        %1258 = vmatprep.subr.mxu0 0.0
        %1259 = vmatpush1.msra.mxu0 %v1139
        %1260 = vmatprep.subr.mxu0 0.0
        %1261 = vmatpush1.msra.mxu0 0.0
        %1262 = vmatprep.subr.mxu0 0.0
        %1263 = vmatpush1.msra.mxu0 0.0
        %1264 = vmatprep.subr.mxu0 0.0
        %1265 = vmatpush1.msra.mxu0 0.0
        %1266 = vmatprep.subr.mxu0 0.0
        %1267 = vmatpush1.msra.mxu0 0.0
        %1268 = vmatprep.subr.mxu0 0.0
        %1269 = vmatpush1.msra.mxu0 0.0
        %1270 = vmatprep.subr.mxu0 0.0
        %1271 = vmatpush1.msra.mxu0 0.0
        %1272 = vmatprep.subr.mxu0 0.0
        %1273 = vmatpush1.msra.mxu0 0.0
        %1274 = vmatprep.subr.mxu0 0.0
        %1275 = vmatpush1.msra.mxu0 0.0
        %1276 = vmatprep.subr.mxu0 0.0
        %1277 = vmatpush1.msra.mxu0 0.0
        %1278 = vmatprep.subr.mxu0 0.0
        %1279 = vmatpush1.msra.mxu0 0.0
        %1280 = vmatprep.subr.mxu0 0.0
        %1281 = vmatpush1.msra.mxu0 0.0
        %1282 = vmatprep.subr.mxu0 0.0
        %1283 = vmatpush1.msra.mxu0 0.0
        %1284 = vmatprep.subr.mxu0 0.0
        %1285 = vmatpush1.msra.mxu0 0.0
        %1286 = vmatprep.subr.mxu0 0.0
        %1287 = vmatpush1.msra.mxu0 0.0
        %1288 = vmatprep.subr.mxu0 0.0
        %1289 = vmatpush1.msra.mxu0 0.0
        %1290 = vmatprep.subr.mxu0 0.0
        %1291 = vmatpush1.msra.mxu0 0.0
        %1292 = vmatprep.mubr.f32.mxu0 0.0
        %1293 = vmatmul.mubr.f32.gmra.mrb[0].mxu0 %v1091
        %v1294 = vpop.f32.mrb[0].mxu0
        %v1295 = vadd.f32 %v1153, %v1294
        %v1296 = vpop.f32.mrb[0].mxu0
        %1297 = vdwg.mxu0
        %v1298 = vld [vmem:[%s9] sm:$0x7]
        %v1300 = vlaneseq
        %v1301 = vshrl.u32 %v1300, 7
        %v1302 = vsub.s32 0, %v1301
        %v1303 = vrot.slane %v1298, %v1302
        %v1304 = vlaneseq
        %v1305 = vshrl.u32 %v1304, 7
        %v1306 = vsub.s32 1, %v1305
        %v1307 = vrot.slane %v1298, %v1306
        %v1308 = vlaneseq
        %v1309 = vshrl.u32 %v1308, 7
        %v1310 = vsub.s32 2, %v1309
        %v1311 = vrot.slane %v1298, %v1310
        %v1315 = vadd.f32 %v855, %v1303
        %v1316 = vadd.f32 %v924, %v1307
        %v1317 = vadd.f32 %v926, %v1311
        %v1318 = vadd.f32 %v1224, %v1315
        %v1319 = vxor.u32 %v1318, 2147483648
        %v1320 = vmul.f32 %v1319, 1.442695
        %v1321 = vpow.pop %v1320
        %v1322 = vadd.f32 %v1321, 1.0
        %v1323 = vrcp.pop %v1322
        %v1324 = vmul.f32 1.0, %v1323
        %v1325 = vadd.f32 %v1226, %v1316
        %v1326 = vxor.u32 %v1325, 2147483648
        %v1327 = vmul.f32 %v1326, 1.442695
        %v1328 = vpow.pop %v1327
        %v1329 = vadd.f32 %v1328, 1.0
        %v1330 = vrcp.pop %v1329
        %v1331 = vmul.f32 1.0, %v1330
        %v1332 = vmul.f32 %v1324, %v1317
        %v1333 = vadd.f32 %v1295, %v1332
        %v1334 = vtanh.pop %v1333
        %v1335 = vsub.f32 1.0, %v1331
        %v1336 = vmul.f32 %v1335, %v1334
        %v1337 = vmul.f32 %v1331, %v522
        %v1338 = vadd.f32 %v1336, %v1337
        %1339 = vst [vmem:[#allocation2] sm:$0x1] %v1338
        %1340 = vst [vmem:[%s512] sm:$0x1] %v1338
        %v1341 = vld [vmem:[#allocation13] sm:$0xff]
        %v1342 = vld [vmem:[#allocation13 + $0x8] sm:$0xff]
        %v1343 = vld [vmem:[#allocation13 + $0x10] sm:$0xff]
        %v1344 = vld [vmem:[#allocation13 + $0x18] sm:$0xff]
        %v1345 = vld [vmem:[#allocation13 + $0x20] sm:$0xff]
        %v1346 = vld [vmem:[#allocation13 + $0x28] sm:$0xff]
        %v1347 = vld [vmem:[#allocation13 + $0x30] sm:$0xff]
        %v1348 = vld [vmem:[#allocation13 + $0x38] sm:$0xff]
        %v1349 = vld [vmem:[#allocation13 + $0x40] sm:$0xff]
        %v1350 = vld [vmem:[#allocation13 + $0x48] sm:$0xff]
        %v1351 = vld [vmem:[#allocation13 + $0x50] sm:$0xff]
        %v1352 = vld [vmem:[#allocation13 + $0x58] sm:$0xff]
        %v1353 = vld [vmem:[#allocation13 + $0x60] sm:$0xff]
        %v1354 = vld [vmem:[#allocation13 + $0x68] sm:$0xff]
        %v1355 = vld [vmem:[#allocation13 + $0x70] sm:$0xff]
        %v1356 = vld [vmem:[#allocation13 + $0x78] sm:$0xff]
        %v1357 = vld [vmem:[%s11] sm:$0x1]
        %1358 = vmatprep.subr.mxu0 0.0
        %1359 = vmatpush1.msra.mxu0 %v1341
        %1360 = vmatprep.subr.mxu0 0.0
        %1361 = vmatpush1.msra.mxu0 %v1342
        %1362 = vmatprep.subr.mxu0 0.0
        %1363 = vmatpush1.msra.mxu0 %v1343
        %1364 = vmatprep.subr.mxu0 0.0
        %1365 = vmatpush1.msra.mxu0 %v1344
        %1366 = vmatprep.subr.mxu0 0.0
        %1367 = vmatpush1.msra.mxu0 %v1345
        %1368 = vmatprep.subr.mxu0 0.0
        %1369 = vmatpush1.msra.mxu0 %v1346
        %1370 = vmatprep.subr.mxu0 0.0
        %1371 = vmatpush1.msra.mxu0 %v1347
        %1372 = vmatprep.subr.mxu0 0.0
        %1373 = vmatpush1.msra.mxu0 %v1348
        %1374 = vmatprep.subr.mxu0 0.0
        %1375 = vmatpush1.msra.mxu0 %v1349
        %1376 = vmatprep.subr.mxu0 0.0
        %1377 = vmatpush1.msra.mxu0 %v1350
        %1378 = vmatprep.subr.mxu0 0.0
        %1379 = vmatpush1.msra.mxu0 %v1351
        %1380 = vmatprep.subr.mxu0 0.0
        %1381 = vmatpush1.msra.mxu0 %v1352
        %1382 = vmatprep.subr.mxu0 0.0
        %1383 = vmatpush1.msra.mxu0 %v1353
        %1384 = vmatprep.subr.mxu0 0.0
        %1385 = vmatpush1.msra.mxu0 %v1354
        %1386 = vmatprep.subr.mxu0 0.0
        %1387 = vmatpush1.msra.mxu0 %v1355
        %1388 = vmatprep.subr.mxu0 0.0
        %1389 = vmatpush1.msra.mxu0 %v1356
        %1390 = vmatprep.subr.mxu0 0.0
        %1391 = vmatpush1.msra.mxu0 0.0
        %1392 = vmatprep.subr.mxu0 0.0
        %1393 = vmatpush1.msra.mxu0 0.0
        %1394 = vmatprep.subr.mxu0 0.0
        %1395 = vmatpush1.msra.mxu0 0.0
        %1396 = vmatprep.subr.mxu0 0.0
        %1397 = vmatpush1.msra.mxu0 0.0
        %1398 = vmatprep.subr.mxu0 0.0
        %1399 = vmatpush1.msra.mxu0 0.0
        %1400 = vmatprep.subr.mxu0 0.0
        %1401 = vmatpush1.msra.mxu0 0.0
        %1402 = vmatprep.subr.mxu0 0.0
        %1403 = vmatpush1.msra.mxu0 0.0
        %1404 = vmatprep.subr.mxu0 0.0
        %1405 = vmatpush1.msra.mxu0 0.0
        %1406 = vmatprep.subr.mxu0 0.0
        %1407 = vmatpush1.msra.mxu0 0.0
        %1408 = vmatprep.subr.mxu0 0.0
        %1409 = vmatpush1.msra.mxu0 0.0
        %1410 = vmatprep.subr.mxu0 0.0
        %1411 = vmatpush1.msra.mxu0 0.0
        %1412 = vmatprep.subr.mxu0 0.0
        %1413 = vmatpush1.msra.mxu0 0.0
        %1414 = vmatprep.subr.mxu0 0.0
        %1415 = vmatpush1.msra.mxu0 0.0
        %1416 = vmatprep.subr.mxu0 0.0
        %1417 = vmatpush1.msra.mxu0 0.0
        %1418 = vmatprep.subr.mxu0 0.0
        %1419 = vmatpush1.msra.mxu0 0.0
        %1420 = vmatprep.subr.mxu0 0.0
        %1421 = vmatpush1.msra.mxu0 0.0
        %1422 = vmatprep.mubr.f32.mxu0 0.0
        %1423 = vmatmul.mubr.f32.gmra.mrb[0].mxu0 %v1338
        %v1424 = vpop.f32.mrb[0].mxu0
        %v1425 = vadd.f32 %v1357, %v1424
        %v1426 = vpop.f32.mrb[0].mxu0
        %1427 = vdwg.mxu0
        %v1428 = vsel %vm942, %v1425, -inf
        %1429 = vmax.xlane.f32.xlu0 %v1428
        %v1430 = vpop.xlane.xlu0 %1429
        %v1431 = vsub.f32 %v1425, %v1430
        %v1432 = vmul.f32 %v1431, 1.442695
        %v1433 = vpow.pop %v1432
        %v1434 = vsel %vm942, %v1433, 0.0
        %1435 = vadd.xlane.f32.xlu0 %v1434
        %v1436 = vpop.xlane.xlu0 %1435
        %v1437 = vlog2.pop %v1436
        %v1438 = vmul.f32 %v1437, 0.6931472
        %v1439 = vadd.f32 %v1438, %v1430
        %v1440 = vsub.f32 %v1425, %v1439
        %1441 = vst [vmem:[%s499] sm:$0x1] %v1440
        %s1442 = sand.u32 %s278, 1
        %s1443 = scalar_lea.sflag [#allocation7], %s1442
        %s1444 = sand.u32 %s278, 1
        %s1445 = scalar_lea.vmem [#allocation14], %s1444
        %s1446 = sand.u32 %s39, 1
        %s1447 = scalar_lea.sflag [#allocation16], %s1446
        %s1448 = sand.u32 %s304, 1
        %s1449 = smul.addr %s1448, 2
        %s1450 = scalar_lea.vmem [#allocation15], %s1449
        %s1451 = sand.u32 %s39, 1
        %s1452 = scalar_lea.sflag [#allocation16], %s1451
        %s1453 = sand.u32 %s330, 1
        %s1454 = scalar_lea.vmem [#allocation17], %s1453
        // Predicated region
        $region89: #{tpu_custom_call.1} parent=63 // pred_check
          %p1455 = pneg %p288
        $region90: #{tpu_custom_call.1} parent=63 // pred_check_branch
          %1457 = sbr.rel (%p1455) target = $region92
        $region91: #{tpu_custom_call.1} parent=63 // pred_region
          %s1459 = ssub.s32 16, 16
          %1460 = vsyncadd %s1443, %s1459
          %s1461 = smul.addr %s39, 16
          %s1462 = scalar_lea.hbm %s12, %s1461
          %s1464 = sshll.u32 %s1445, 4
          %s1465 = int_to_ptr.vmem [resolvable:$true] %s1464
          %1467 = dma.vmem_to_hbm [thread:$0]  %s1465, 16, %s1462, %s1443
        $region92: #{tpu_custom_call.1} parent=63 // pred_fallthru
          _
        // Predicated region
        $region93: #{tpu_custom_call.1} parent=63 // pred_check
          %p1468 = pneg %p314
        $region94: #{tpu_custom_call.1} parent=63 // pred_check_branch
          %1470 = sbr.rel (%p1468) target = $region96
        $region95: #{tpu_custom_call.1} parent=63 // pred_region
          %s1472 = ssub.s32 32, 32
          %1473 = vsyncadd %s1447, %s1472
          %s1474 = smul.addr %s39, 2
          %s1475 = smul.addr %s1474, 16
          %s1476 = scalar_lea.hbm %s13, %s1475
          %s1478 = sshll.u32 %s1450, 4
          %s1479 = int_to_ptr.vmem [resolvable:$true] %s1478
          %1481 = dma.vmem_to_hbm [thread:$0]  %s1479, 32, %s1476, %s1447
        $region96: #{tpu_custom_call.1} parent=63 // pred_fallthru
          _
        // Predicated region
        $region97: #{tpu_custom_call.1} parent=63 // pred_check
          %p1482 = pneg %p340
        $region98: #{tpu_custom_call.1} parent=63 // pred_check_branch
          %1484 = sbr.rel (%p1482) target = $region100
        $region99: #{tpu_custom_call.1} parent=63 // pred_region
          %s1486 = ssub.s32 16, 16
          %1487 = vsyncadd %s1452, %s1486
          %s1488 = smul.addr %s39, 16
          %s1489 = scalar_lea.hbm %s14, %s1488
          %s1491 = sshll.u32 %s1454, 4
          %s1492 = int_to_ptr.vmem [resolvable:$true] %s1491
          %1494 = dma.vmem_to_hbm [thread:$0]  %s1492, 16, %s1489, %s1452
        $region100: #{tpu_custom_call.1} parent=63 // pred_fallthru
          _
      $region64: #{tpu_custom_call.1} parent=5 // pred_fallthru
        _
      %p1495 = scmp.le.s32.totalorder 2, %s34
      // Predicated region
      $region101: #{tpu_custom_call.1} parent=5 // pred_check
        %p1496 = pneg %p1495
      $region102: #{tpu_custom_call.1} parent=5 // pred_check_branch
        %1498 = sbr.rel (%p1496) target = $region104
      $region103: #{tpu_custom_call.1} parent=5 // pred_region
        %s1499 = ssub.s32 %s34, 2
        // Predicated region
        $region105: #{tpu_custom_call.1} parent=103 // pred_check
          %p1500 = pneg %p294
        $region106: #{tpu_custom_call.1} parent=103 // pred_check_branch
          %1502 = sbr.rel (%p1500) target = $region108
        $region107: #{tpu_custom_call.1} parent=103 // pred_region
          %s1503 = sand.u32 %s279, 1
          %s1504 = scalar_lea.sflag [#allocation7], %s1503
          %s1505 = sand.u32 %s279, 1
          %s1506 = scalar_lea.vmem [#allocation14], %s1505
          %1507 = dma.done %s1504, 16
        $region108: #{tpu_custom_call.1} parent=103 // pred_fallthru
          _
        // Predicated region
        $region109: #{tpu_custom_call.1} parent=103 // pred_check
          %p1508 = pneg %p320
        $region110: #{tpu_custom_call.1} parent=103 // pred_check_branch
          %1510 = sbr.rel (%p1508) target = $region112
        $region111: #{tpu_custom_call.1} parent=103 // pred_region
          %s1511 = sand.u32 %s40, 1
          %s1512 = scalar_lea.sflag [#allocation16], %s1511
          %s1513 = sand.u32 %s305, 1
          %s1514 = smul.addr %s1513, 2
          %s1515 = scalar_lea.vmem [#allocation15], %s1514
          %1516 = dma.done %s1512, 32
        $region112: #{tpu_custom_call.1} parent=103 // pred_fallthru
          _
        // Predicated region
        $region113: #{tpu_custom_call.1} parent=103 // pred_check
          %p1517 = pneg %p346
        $region114: #{tpu_custom_call.1} parent=103 // pred_check_branch
          %1519 = sbr.rel (%p1517) target = $region116
        $region115: #{tpu_custom_call.1} parent=103 // pred_region
          %s1520 = sand.u32 %s40, 1
          %s1521 = scalar_lea.sflag [#allocation16], %s1520
          %s1522 = sand.u32 %s331, 1
          %s1523 = scalar_lea.vmem [#allocation17], %s1522
          %1524 = dma.done %s1521, 16
        $region116: #{tpu_custom_call.1} parent=103 // pred_fallthru
          _
      $region104: #{tpu_custom_call.1} parent=5 // pred_fallthru
        _
    $region6: #{tpu_custom_call.1} parent=1 // loop_footer
      %s38 = sadd.s32 1, %s34
    $region7: #{tpu_custom_call.1} parent=1 // loop_footer_branch
      %33 = sbr.rel target = $region3
    $region8: #{tpu_custom_call.1} parent=1 // loop_exit
      _
    %1525 = vsyncpa [#allocation6], 1
    %s1526 = scalar_lea.sflag [#allocation6], 1
    %1527 = vsyncpa %s1526, 1
    %1528 = vsyncpa [#allocation9], 1
    %1529 = vsyncpa [#allocation12], 1
    %1530 = vsyncpa [#allocation7], 1
    %s1531 = scalar_lea.sflag [#allocation7], 1
    %1532 = vsyncpa %s1531, 1
    %1533 = vsyncpa [#allocation16], 1
    %s1534 = scalar_lea.sflag [#allocation16], 1
    %1535 = vsyncpa %s1534, 1

</llo_original>
